<compile_context>
chip_gen: v7x
topology: tpu7x:2x2x1
jax: 0.10.0
libtpu: 0.0.40
codegen_flags: <defaults>
</compile_context>

<pallas_src>
import functools

import jax
import jax.numpy as jnp
from jax.experimental import pallas as pl
from jax.experimental.pallas import tpu as pltpu


# ----------------------------------------------------------------------------
# helpers
# ----------------------------------------------------------------------------
def _pick_tile(dim, max_tile, align):
    """Largest tile <= max_tile that divides `dim` (aligned), else full dim."""
    if dim <= max_tile:
        return dim
    t = (max_tile // align) * align
    while t >= align:
        if dim % t == 0:
            return t
        t -= align
    return dim


# ----------------------------------------------------------------------------
# Kernel 1: GRU input projection for ALL time steps (one fused MXU matmul)
#   gi = x @ W_ih_fused + [b_ir+b_hr, b_iz+b_hz, b_in]           -> (N, 3H) bf16
# ----------------------------------------------------------------------------
def gi_proj_kernel(x_ref, w_ref, b_ref, gi_ref):
    x = x_ref[...].astype(jnp.bfloat16)
    gi_ref[...] = (
        jnp.dot(x, w_ref[...], preferred_element_type=jnp.float32)
        + b_ref[...]
    ).astype(gi_ref.dtype)


def run_gi_proj(x_flat, p):
    # x_flat: (N = S*B, E) time-major rows
    N, E = x_flat.shape
    H3 = p["gru_w_ih"].shape[1]
    tn = _pick_tile(N, 512, 8)
    grid = (N // tn,)
    return pl.pallas_call(
        gi_proj_kernel,
        out_shape=jax.ShapeDtypeStruct((N, H3), jnp.bfloat16),
        grid_spec=pltpu.PrefetchScalarGridSpec(
            num_scalar_prefetch=0,
            grid=grid,
            in_specs=[
                pl.BlockSpec((tn, E), lambda i: (i, 0)),
                pl.BlockSpec((E, H3), lambda i: (0, 0)),
                pl.BlockSpec((1, H3), lambda i: (0, 0)),
            ],
            out_specs=pl.BlockSpec((tn, H3), lambda i: (i, 0)),
        ),
        compiler_params=pltpu.CompilerParams(
            dimension_semantics=("parallel",),
            vmem_limit_bytes=32 * 1024 * 1024),
    )(x_flat, p["gru_w_ih"], p["gi_b"])


# ----------------------------------------------------------------------------
# Kernel 2: GRU recurrence. One grid step per chunk of t_chunk time steps;
# a single fused h @ W_hh (H, 3H) matmul per step is all that remains on the
# serial critical path. Output is written directly in batch-major (B, S, H).
# ----------------------------------------------------------------------------
# TODO(synk): on v7x the batch dim could be split over the 2 TensorCores with
# a leading 'parallel' grid axis (independent h slices); left out for clarity.
def gru_kernel(gi_ref, whh_ref, bhn_ref, out_ref, h_scratch, *, t_chunk):
    H = whh_ref.shape[0]
    B = h_scratch.shape[0]

    @pl.when(pl.program_id(0) == 0)
    def _():
        h_scratch[...] = jnp.zeros_like(h_scratch)

    whh = whh_ref[...]
    bhn = jnp.broadcast_to(bhn_ref[...], (B, H))   # hoisted out of the loop

    h = h_scratch[...]                              # f32 carry
    for t in range(t_chunk):                        # fully unrolled (static t)
        hb = h.astype(jnp.bfloat16)
        s = jnp.dot(hb, whh, preferred_element_type=jnp.float32)   # (B, 3H)
        gi_t = gi_ref[t].astype(jnp.float32)                        # (B, 3H)
        r = jax.nn.sigmoid(gi_t[:, :H] + s[:, :H])
        z = jax.nn.sigmoid(gi_t[:, H:2 * H] + s[:, H:2 * H])
        n = jnp.tanh(gi_t[:, 2 * H:] + r * (s[:, 2 * H:] + bhn))
        h = (1.0 - z) * n + z * h
        out_ref[:, t, :] = h.astype(out_ref.dtype)  # batch-major write
    h_scratch[...] = h


def run_gru(gi, p):
    # gi: (S, B, 3H) time-major, bf16
    S, B, H3 = gi.shape
    H = H3 // 3
    tc = _pick_tile(S, 32, 8)          # time steps per grid iteration
    grid = (S // tc,)

    return pl.pallas_call(
        functools.partial(gru_kernel, t_chunk=tc),
        out_shape=jax.ShapeDtypeStruct((B, S, H), jnp.bfloat16),
        grid_spec=pltpu.PrefetchScalarGridSpec(
            num_scalar_prefetch=0,
            grid=grid,
            in_specs=[
                pl.BlockSpec((tc, B, H3), lambda c: (c, 0, 0)),   # gi chunk
                pl.BlockSpec((H, H3), lambda c: (0, 0)),          # fused W_hh
                pl.BlockSpec((1, H), lambda c: (0, 0)),           # b_hn
            ],
            out_specs=pl.BlockSpec((B, tc, H), lambda c: (0, c, 0)),
            scratch_shapes=[pltpu.VMEM((B, H), jnp.float32)],
        ),
        compiler_params=pltpu.CompilerParams(
            dimension_semantics=("arbitrary",),
            vmem_limit_bytes=32 * 1024 * 1024),
    )(gi, p["gru_w_hh"], p["gru_b_hn"])


# ----------------------------------------------------------------------------
# Kernel 3: fused encoder / latent sampling / decoder MLP.
# Grid: (row tiles of N, column tiles of padded num_items).
# The "front" (encoder, fused mu/log_sigma head, reparameterization, decoder
# layer 1) runs once per row tile (j == 0); d1 is cached in VMEM scratch and
# each column tile only runs the big d1 @ dec_w2 matmul.
# ----------------------------------------------------------------------------
def svae_mlp_kernel(h_ref, we_ref, be_ref, wml_ref, bml_ref, eps_ref,
                    wd1_ref, bd1_ref, wd2_ref, bd2_ref,
                    dec_ref, mu_ref, ls_ref, d1_scratch):
    j = pl.program_id(1)
    L = eps_ref.shape[1]

    @pl.when(j == 0)
    def _():
        rnn = h_ref[...]                                   # already bf16
        # Encoder: linear + tanh
        enc = jnp.tanh(
            jnp.dot(rnn, we_ref[...], preferred_element_type=jnp.float32)
            + be_ref[...]).astype(jnp.bfloat16)
        # sample_latent: fused (mu | log_sigma) head -> reparameterize
        mls = (jnp.dot(enc, wml_ref[...], preferred_element_type=jnp.float32)
               + bml_ref[...])
        mu = mls[:, :L]
        ls = mls[:, L:]
        z_lat = mu + jnp.exp(ls) * eps_ref[...]
        # Decoder layer 1: linear + tanh
        d1 = jnp.tanh(
            jnp.dot(z_lat.astype(jnp.bfloat16), wd1_ref[...],
                    preferred_element_type=jnp.float32) + bd1_ref[...])
        d1_scratch[...] = d1.astype(jnp.bfloat16)
        mu_ref[...] = mu          # output blocks are resident across j
        ls_ref[...] = ls

    # Decoder layer 2 for this column tile (lane-dense, padded num_items).
    dec_ref[...] = (jnp.dot(d1_scratch[...], wd2_ref[...],
                            preferred_element_type=jnp.float32)
                    + bd2_ref[...])


def run_mlp(rnn_flat, eps, p):
    N, R = rnn_flat.shape
    hidden = p["enc_w"].shape[1]
    L = eps.shape[1]
    num_items_p = p["dec_w2"].shape[1]       # padded to a multiple of 128

    tn = _pick_tile(N, 512, 8)
    ti = _pick_tile(num_items_p, 1024, 128)
    grid = (N // tn, num_items_p // ti)

    return pl.pallas_call(
        svae_mlp_kernel,
        out_shape=(
            jax.ShapeDtypeStruct((N, num_items_p), jnp.float32),
            jax.ShapeDtypeStruct((N, L), jnp.float32),
            jax.ShapeDtypeStruct((N, L), jnp.float32),
        ),
        grid_spec=pltpu.PrefetchScalarGridSpec(
            num_scalar_prefetch=0,
            grid=grid,
            in_specs=[
                pl.BlockSpec((tn, R), lambda i, j: (i, 0)),        # rnn rows
                pl.BlockSpec((R, hidden), lambda i, j: (0, 0)),    # enc_w
                pl.BlockSpec((1, hidden), lambda i, j: (0, 0)),    # enc_b
                pl.BlockSpec((hidden, 2 * L), lambda i, j: (0, 0)),  # w mu|ls
                pl.BlockSpec((1, 2 * L), lambda i, j: (0, 0)),       # b mu|ls
                pl.BlockSpec((tn, L), lambda i, j: (i, 0)),        # eps rows
                pl.BlockSpec((L, hidden), lambda i, j: (0, 0)),    # dec_w1
                pl.BlockSpec((1, hidden), lambda i, j: (0, 0)),    # dec_b1
                pl.BlockSpec((hidden, ti), lambda i, j: (0, j)),   # dec_w2 col
                pl.BlockSpec((1, ti), lambda i, j: (0, j)),        # dec_b2 col
            ],
            out_specs=(
                pl.BlockSpec((tn, ti), lambda i, j: (i, j)),       # dec
                pl.BlockSpec((tn, L), lambda i, j: (i, 0)),        # mu
                pl.BlockSpec((tn, L), lambda i, j: (i, 0)),        # log_sigma
            ),
            scratch_shapes=[
                pltpu.VMEM((tn, hidden), jnp.bfloat16),            # d1 cache
            ],
        ),
        compiler_params=pltpu.CompilerParams(
            dimension_semantics=("parallel", "arbitrary"),
            vmem_limit_bytes=48 * 1024 * 1024),
    )(rnn_flat, p["enc_w"], p["enc_b"], p["lin1_w"], p["lin1_b"], eps,
      p["dec_w1"], p["dec_b1"], p["dec_w2"], p["dec_b2"])


# ----------------------------------------------------------------------------
# Parameter init (deterministic, mirrors the PyTorch module's shapes).
# Matmul weights stored fused + bf16, biases in f32, decoder columns padded
# to a multiple of 128. No python ints live inside the params pytree.
# ----------------------------------------------------------------------------
def init_params(key, rnn_size, hidden_size, latent_size, num_items,
                item_embed_size):
    ks = jax.random.split(key, 16)

    def xavier(k, fan_in, fan_out):
        std = (2.0 / (fan_in + fan_out)) ** 0.5
        return std * jax.random.normal(k, (fan_in, fan_out), jnp.float32)

    def unif(k, shape, bound):
        return jax.random.uniform(k, shape, jnp.float32, -bound, bound)

    H = rnn_size
    E = item_embed_size
    kb = 1.0 / (H ** 0.5)
    bf = jnp.bfloat16

    w_ih = xavier(ks[1], E, 3 * H)
    w_hh = xavier(ks[2], H, 3 * H)
    b_ih = unif(ks[3], (1, 3 * H), kb)
    b_hh = unif(ks[4], (1, 3 * H), kb)
    # folded gi bias: r,z gates get b_ih + b_hh; n gate keeps only b_in
    gi_b = jnp.concatenate(
        [b_ih[:, :2 * H] + b_hh[:, :2 * H], b_ih[:, 2 * H:]], axis=1)

    lin1_w = xavier(ks[7], hidden_size, 2 * latent_size)
    lin1_b = unif(ks[8], (1, 2 * latent_size), 1.0 / (hidden_size ** 0.5))

    # decoder layer-2, padded to lane-dense width
    ni_pad = ((num_items + 127) // 128) * 128
    dec_w2 = xavier(ks[11], hidden_size, num_items)
    dec_b2 = unif(ks[12], (1, num_items), 1.0 / (hidden_size ** 0.5))
    dec_w2 = jnp.pad(dec_w2, ((0, 0), (0, ni_pad - num_items)))
    dec_b2 = jnp.pad(dec_b2, ((0, 0), (0, ni_pad - num_items)))

    params = {
        "item_embed": jax.random.normal(ks[0], (num_items, E), jnp.float32),
        # GRU (fused gate weights; lane-dense 3H outputs)
        "gru_w_ih": w_ih.astype(bf),
        "gru_w_hh": w_hh.astype(bf),
        "gi_b": gi_b,
        "gru_b_hn": b_hh[:, 2 * H:],
        # Encoder
        "enc_w": xavier(ks[5], rnn_size, hidden_size).astype(bf),
        "enc_b": unif(ks[6], (1, hidden_size), 1.0 / (rnn_size ** 0.5)),
        # linear1 (fused mu | log_sigma head)
        "lin1_w": lin1_w.astype(bf),
        "lin1_b": lin1_b,
        # Decoder
        "dec_w1": xavier(ks[9], latent_size, hidden_size).astype(bf),
        "dec_b1": unif(ks[10], (1, hidden_size), 1.0 / (latent_size ** 0.5)),
        "dec_w2": dec_w2.astype(bf),
        "dec_b2": dec_b2,
    }
    return params


# ----------------------------------------------------------------------------
# Forward pass
# ----------------------------------------------------------------------------
@jax.jit
def svae_forward(x_idx, eps, params):
    B, S = x_idx.shape
    H = params["gru_w_hh"].shape[0]
    num_items = params["item_embed"].shape[0]
    num_items_p = params["dec_w2"].shape[1]

    # Embedding gather directly in TIME-MAJOR row order (S*B, E).
    # TODO(synk): the random row gather itself stays in XLA (no clean
    # rectangular-tile BlockSpec / cheap Element-gather at this grid size).
    idx_tm = jnp.transpose(x_idx).reshape(-1)
    emb_tm = jnp.take(params["item_embed"], idx_tm, axis=0)      # (S*B, E)

    # Hoisted fused input projection for all time steps.
    gi = run_gi_proj(emb_tm, params)                              # (S*B, 3H)
    gi = gi.reshape(S, B, 3 * H)

    # Serial GRU recurrence (chunked over time), output already batch-major.
    rnn_bm = run_gru(gi, params)                                  # (B, S, H)
    rnn_flat = rnn_bm.reshape(B * S, H)                           # free reshape

    dec, mu, log_sigma = run_mlp(rnn_flat, eps, params)
    if num_items_p != num_items:
        dec = dec[:, :num_items]
    dec = dec.reshape(B, S, num_items)
    return dec, mu, log_sigma


if __name__ == "__main__":
    # Small, module-consistent sizes.
    B, S = 2, 8
    rnn_size, hidden_size, latent_size = 32, 32, 16
    num_items, item_embed_size = 40, 16

    key = jax.random.PRNGKey(0)
    k_params, k_idx, k_eps = jax.random.split(key, 3)

    params = init_params(k_params, rnn_size, hidden_size, latent_size,
                         num_items, item_embed_size)
    x_idx = jax.random.randint(k_idx, (B, S), 0, num_items, dtype=jnp.int32)
    # std_z ~ N(0,1): the PyTorch module draws with np.random; here a
    # deterministic JAX draw (batch-major B*S row order) supplies that role.
    eps = jax.random.normal(k_eps, (B * S, latent_size), jnp.float32)

    dec_out, z_mean, z_log_sigma = svae_forward(x_idx, eps, params)
    jax.block_until_ready((dec_out, z_mean, z_log_sigma))

    assert dec_out.shape == (B, S, num_items)
    assert z_mean.shape == (B * S, latent_size)
    assert z_log_sigma.shape == (B * S, latent_size)
    assert bool(jnp.all(jnp.isfinite(dec_out)))
    assert bool(jnp.all(jnp.isfinite(z_mean)))
    assert bool(jnp.all(jnp.isfinite(z_log_sigma)))
    print("KERNEL_OK")
</pallas_src>

<mosaic_0001>
module attributes {stable_mosaic.version = 11 : i64} {
  func.func @svae_mlp_kernel(%arg0: i32, %arg1: i32, %arg2: memref<16x32xbf16, #tpu.memory_space<vmem>>, %arg3: memref<32x32xbf16, #tpu.memory_space<vmem>>, %arg4: memref<1x32xf32, #tpu.memory_space<vmem>>, %arg5: memref<32x32xbf16, #tpu.memory_space<vmem>>, %arg6: memref<1x32xf32, #tpu.memory_space<vmem>>, %arg7: memref<16x16xf32, #tpu.memory_space<vmem>>, %arg8: memref<16x32xbf16, #tpu.memory_space<vmem>>, %arg9: memref<1x32xf32, #tpu.memory_space<vmem>>, %arg10: memref<32x128xbf16, #tpu.memory_space<vmem>>, %arg11: memref<1x128xf32, #tpu.memory_space<vmem>>, %arg12: memref<16x128xf32, #tpu.memory_space<vmem>>, %arg13: memref<16x16xf32, #tpu.memory_space<vmem>>, %arg14: memref<16x16xf32, #tpu.memory_space<vmem>>, %arg15: memref<16x32xbf16, #tpu.memory_space<vmem>>) attributes {dimension_semantics = [#tpu.dimension_semantics<parallel>, #tpu.dimension_semantics<arbitrary>], iteration_bounds = array<i64: 1, 1>, scalar_prefetch = 0 : i64, scratch_operands = 1 : i64, tpu.core_type = #tpu.core_type<tc>, window_params = [{transform_indices = @transform_0, window_bounds = array<i64: 16, 32>}, {pipeline_mode = #tpu.pipeline_mode<synchronous>, transform_indices = @transform_1, window_bounds = array<i64: 32, 32>}, {pipeline_mode = #tpu.pipeline_mode<synchronous>, transform_indices = @transform_2, window_bounds = array<i64: 1, 32>}, {pipeline_mode = #tpu.pipeline_mode<synchronous>, transform_indices = @transform_3, window_bounds = array<i64: 32, 32>}, {pipeline_mode = #tpu.pipeline_mode<synchronous>, transform_indices = @transform_4, window_bounds = array<i64: 1, 32>}, {transform_indices = @transform_5, window_bounds = array<i64: 16, 16>}, {pipeline_mode = #tpu.pipeline_mode<synchronous>, transform_indices = @transform_6, window_bounds = array<i64: 16, 32>}, {pipeline_mode = #tpu.pipeline_mode<synchronous>, transform_indices = @transform_7, window_bounds = array<i64: 1, 32>}, {transform_indices = @transform_8, window_bounds = array<i64: 32, 128>}, {transform_indices = @transform_9, window_bounds = array<i64: 1, 128>}, {transform_indices = @transform_10, window_bounds = array<i64: 16, 128>}, {transform_indices = @transform_11, window_bounds = array<i64: 16, 16>}, {transform_indices = @transform_12, window_bounds = array<i64: 16, 16>}]} {
    %c0_i32 = arith.constant 0 : i32
    %0 = arith.cmpi eq, %arg1, %c0_i32 : i32
    %1 = arith.extui %0 : i1 to i32
    %c0_i32_0 = arith.constant 0 : i32
    %2 = arith.cmpi ne, %1, %c0_i32_0 : i32
    scf.if %2 {
      %c0_8 = arith.constant 0 : index
      %c0_9 = arith.constant 0 : index
      %10 = vector.load %arg2[%c0_8, %c0_9] : memref<16x32xbf16, #tpu.memory_space<vmem>>, vector<16x32xbf16>
      %c0_10 = arith.constant 0 : index
      %c0_11 = arith.constant 0 : index
      %11 = vector.load %arg3[%c0_10, %c0_11] : memref<32x32xbf16, #tpu.memory_space<vmem>>, vector<32x32xbf16>
      %cst_12 = arith.constant dense<0.000000e+00> : vector<16x32xf32>
      %12 = tpu.matmul %10, %11, %cst_12 {dimension_numbers = #tpu.dot_dimension_numbers<[1], [0], [0], [1], [0, 0, 1, 1], [], []>} : vector<16x32xbf16>, vector<32x32xbf16>, vector<16x32xf32> -> vector<16x32xf32>
      %c0_13 = arith.constant 0 : index
      %c0_14 = arith.constant 0 : index
      %13 = vector.load %arg4[%c0_13, %c0_14] : memref<1x32xf32, #tpu.memory_space<vmem>>, vector<1x32xf32>
      %14 = vector.broadcast %13 : vector<1x32xf32> to vector<16x32xf32>
      %15 = arith.addf %12, %14 : vector<16x32xf32>
      %16 = math.tanh %15 : vector<16x32xf32>
      %17 = arith.truncf %16 : vector<16x32xf32> to vector<16x32xbf16>
      %c0_15 = arith.constant 0 : index
      %c0_16 = arith.constant 0 : index
      %18 = vector.load %arg5[%c0_15, %c0_16] : memref<32x32xbf16, #tpu.memory_space<vmem>>, vector<32x32xbf16>
      %cst_17 = arith.constant dense<0.000000e+00> : vector<16x32xf32>
      %19 = tpu.matmul %17, %18, %cst_17 {dimension_numbers = #tpu.dot_dimension_numbers<[1], [0], [0], [1], [0, 0, 1, 1], [], []>} : vector<16x32xbf16>, vector<32x32xbf16>, vector<16x32xf32> -> vector<16x32xf32>
      %c0_18 = arith.constant 0 : index
      %c0_19 = arith.constant 0 : index
      %20 = vector.load %arg6[%c0_18, %c0_19] : memref<1x32xf32, #tpu.memory_space<vmem>>, vector<1x32xf32>
      %21 = vector.broadcast %20 : vector<1x32xf32> to vector<16x32xf32>
      %22 = arith.addf %19, %21 : vector<16x32xf32>
      %23 = vector.extract_strided_slice %22 {offsets = [0, 0], sizes = [16, 16], strides = [1, 1]} : vector<16x32xf32> to vector<16x16xf32>
      %24 = vector.extract_strided_slice %22 {offsets = [0, 16], sizes = [16, 16], strides = [1, 1]} : vector<16x32xf32> to vector<16x16xf32>
      %25 = math.exp %24 : vector<16x16xf32>
      %c0_20 = arith.constant 0 : index
      %c0_21 = arith.constant 0 : index
      %26 = vector.load %arg7[%c0_20, %c0_21] : memref<16x16xf32, #tpu.memory_space<vmem>>, vector<16x16xf32>
      %27 = arith.mulf %25, %26 : vector<16x16xf32>
      %28 = arith.addf %23, %27 : vector<16x16xf32>
      %29 = arith.truncf %28 : vector<16x16xf32> to vector<16x16xbf16>
      %c0_22 = arith.constant 0 : index
      %c0_23 = arith.constant 0 : index
      %30 = vector.load %arg8[%c0_22, %c0_23] : memref<16x32xbf16, #tpu.memory_space<vmem>>, vector<16x32xbf16>
      %cst_24 = arith.constant dense<0.000000e+00> : vector<16x32xf32>
      %31 = tpu.matmul %29, %30, %cst_24 {dimension_numbers = #tpu.dot_dimension_numbers<[1], [0], [0], [1], [0, 0, 1, 1], [], []>} : vector<16x16xbf16>, vector<16x32xbf16>, vector<16x32xf32> -> vector<16x32xf32>
      %c0_25 = arith.constant 0 : index
      %c0_26 = arith.constant 0 : index
      %32 = vector.load %arg9[%c0_25, %c0_26] : memref<1x32xf32, #tpu.memory_space<vmem>>, vector<1x32xf32>
      %33 = vector.broadcast %32 : vector<1x32xf32> to vector<16x32xf32>
      %34 = arith.addf %31, %33 : vector<16x32xf32>
      %35 = math.tanh %34 : vector<16x32xf32>
      %36 = arith.truncf %35 : vector<16x32xf32> to vector<16x32xbf16>
      %c0_27 = arith.constant 0 : index
      %c0_28 = arith.constant 0 : index
      %37 = vector.load %arg15[%c0_27, %c0_28] : memref<16x32xbf16, #tpu.memory_space<vmem>>, vector<16x32xbf16>
      tpu.vector_store %arg15[%c0_27, %c0_28], %36 {strides = array<i32>} : memref<16x32xbf16, #tpu.memory_space<vmem>>, vector<16x32xbf16>,
      %c0_29 = arith.constant 0 : index
      %c0_30 = arith.constant 0 : index
      %38 = vector.load %arg13[%c0_29, %c0_30] : memref<16x16xf32, #tpu.memory_space<vmem>>, vector<16x16xf32>
      tpu.vector_store %arg13[%c0_29, %c0_30], %23 {strides = array<i32>} : memref<16x16xf32, #tpu.memory_space<vmem>>, vector<16x16xf32>,
      %c0_31 = arith.constant 0 : index
      %c0_32 = arith.constant 0 : index
      %39 = vector.load %arg14[%c0_31, %c0_32] : memref<16x16xf32, #tpu.memory_space<vmem>>, vector<16x16xf32>
      tpu.vector_store %arg14[%c0_31, %c0_32], %24 {strides = array<i32>} : memref<16x16xf32, #tpu.memory_space<vmem>>, vector<16x16xf32>,
    } else {
    }
    %c0 = arith.constant 0 : index
    %c0_1 = arith.constant 0 : index
    %3 = vector.load %arg15[%c0, %c0_1] : memref<16x32xbf16, #tpu.memory_space<vmem>>, vector<16x32xbf16>
    %c0_2 = arith.constant 0 : index
    %c0_3 = arith.constant 0 : index
    %4 = vector.load %arg10[%c0_2, %c0_3] : memref<32x128xbf16, #tpu.memory_space<vmem>>, vector<32x128xbf16>
    %cst = arith.constant dense<0.000000e+00> : vector<16x128xf32>
    %5 = tpu.matmul %3, %4, %cst {dimension_numbers = #tpu.dot_dimension_numbers<[1], [0], [0], [1], [0, 0, 1, 1], [], []>} : vector<16x32xbf16>, vector<32x128xbf16>, vector<16x128xf32> -> vector<16x128xf32>
    %c0_4 = arith.constant 0 : index
    %c0_5 = arith.constant 0 : index
    %6 = vector.load %arg11[%c0_4, %c0_5] : memref<1x128xf32, #tpu.memory_space<vmem>>, vector<1x128xf32>
    %7 = vector.broadcast %6 : vector<1x128xf32> to vector<16x128xf32>
    %8 = arith.addf %5, %7 : vector<16x128xf32>
    %c0_6 = arith.constant 0 : index
    %c0_7 = arith.constant 0 : index
    %9 = vector.load %arg12[%c0_6, %c0_7] : memref<16x128xf32, #tpu.memory_space<vmem>>, vector<16x128xf32>
    tpu.vector_store %arg12[%c0_6, %c0_7], %8 {strides = array<i32>} : memref<16x128xf32, #tpu.memory_space<vmem>>, vector<16x128xf32>,
    return
  }
  func.func @transform_0(%arg0: i32, %arg1: i32) -> (i32, i32) {
    %c0_i32 = arith.constant 0 : i32
    %c0_i32_0 = arith.constant 0 : i32
    return %arg0, %c0_i32 : i32, i32
  }
  func.func @transform_1(%arg0: i32, %arg1: i32) -> (i32, i32) {
    %c0_i32 = arith.constant 0 : i32
    %c0_i32_0 = arith.constant 0 : i32
    %c0_i32_1 = arith.constant 0 : i32
    return %c0_i32, %c0_i32_0 : i32, i32
  }
  func.func @transform_2(%arg0: i32, %arg1: i32) -> (i32, i32) {
    %c0_i32 = arith.constant 0 : i32
    %c0_i32_0 = arith.constant 0 : i32
    %c0_i32_1 = arith.constant 0 : i32
    return %c0_i32, %c0_i32_0 : i32, i32
  }
  func.func @transform_3(%arg0: i32, %arg1: i32) -> (i32, i32) {
    %c0_i32 = arith.constant 0 : i32
    %c0_i32_0 = arith.constant 0 : i32
    %c0_i32_1 = arith.constant 0 : i32
    return %c0_i32, %c0_i32_0 : i32, i32
  }
  func.func @transform_4(%arg0: i32, %arg1: i32) -> (i32, i32) {
    %c0_i32 = arith.constant 0 : i32
    %c0_i32_0 = arith.constant 0 : i32
    %c0_i32_1 = arith.constant 0 : i32
    return %c0_i32, %c0_i32_0 : i32, i32
  }
  func.func @transform_5(%arg0: i32, %arg1: i32) -> (i32, i32) {
    %c0_i32 = arith.constant 0 : i32
    %c0_i32_0 = arith.constant 0 : i32
    return %arg0, %c0_i32 : i32, i32
  }
  func.func @transform_6(%arg0: i32, %arg1: i32) -> (i32, i32) {
    %c0_i32 = arith.constant 0 : i32
    %c0_i32_0 = arith.constant 0 : i32
    %c0_i32_1 = arith.constant 0 : i32
    return %c0_i32, %c0_i32_0 : i32, i32
  }
  func.func @transform_7(%arg0: i32, %arg1: i32) -> (i32, i32) {
    %c0_i32 = arith.constant 0 : i32
    %c0_i32_0 = arith.constant 0 : i32
    %c0_i32_1 = arith.constant 0 : i32
    return %c0_i32, %c0_i32_0 : i32, i32
  }
  func.func @transform_8(%arg0: i32, %arg1: i32) -> (i32, i32) {
    %c0_i32 = arith.constant 0 : i32
    %c0_i32_0 = arith.constant 0 : i32
    return %c0_i32, %arg1 : i32, i32
  }
  func.func @transform_9(%arg0: i32, %arg1: i32) -> (i32, i32) {
    %c0_i32 = arith.constant 0 : i32
    %c0_i32_0 = arith.constant 0 : i32
    return %c0_i32, %arg1 : i32, i32
  }
  func.func @transform_10(%arg0: i32, %arg1: i32) -> (i32, i32) {
    %c0_i32 = arith.constant 0 : i32
    return %arg0, %arg1 : i32, i32
  }
  func.func @transform_11(%arg0: i32, %arg1: i32) -> (i32, i32) {
    %c0_i32 = arith.constant 0 : i32
    %c0_i32_0 = arith.constant 0 : i32
    return %arg0, %c0_i32 : i32, i32
  }
  func.func @transform_12(%arg0: i32, %arg1: i32) -> (i32, i32) {
    %c0_i32 = arith.constant 0 : i32
    %c0_i32_0 = arith.constant 0 : i32
    return %arg0, %c0_i32 : i32, i32
  }
}

module attributes {stable_mosaic.version = 11 : i64} {
  func.func @gru_kernel(%arg0: i32, %arg1: memref<8x2x96xbf16, #tpu.memory_space<vmem>>, %arg2: memref<32x96xbf16, #tpu.memory_space<vmem>>, %arg3: memref<1x32xf32, #tpu.memory_space<vmem>>, %arg4: memref<2x8x32xbf16, #tpu.memory_space<vmem>>, %arg5: memref<2x32xf32, #tpu.memory_space<vmem>>) attributes {dimension_semantics = [#tpu.dimension_semantics<arbitrary>], iteration_bounds = array<i64: 1>, scalar_prefetch = 0 : i64, scratch_operands = 1 : i64, tpu.core_type = #tpu.core_type<tc>, window_params = [{transform_indices = @transform_0, window_bounds = array<i64: 8, 2, 96>}, {pipeline_mode = #tpu.pipeline_mode<synchronous>, transform_indices = @transform_1, window_bounds = array<i64: 32, 96>}, {pipeline_mode = #tpu.pipeline_mode<synchronous>, transform_indices = @transform_2, window_bounds = array<i64: 1, 32>}, {transform_indices = @transform_3, window_bounds = array<i64: 2, 8, 32>}]} {
    %c0_i32 = arith.constant 0 : i32
    %0 = arith.cmpi eq, %arg0, %c0_i32 : i32
    %1 = arith.extui %0 : i1 to i32
    %c0_i32_0 = arith.constant 0 : i32
    %2 = arith.cmpi ne, %1, %c0_i32_0 : i32
    scf.if %2 {
      %cst_80 = arith.constant 0.000000e+00 : f32
      %297 = vector.broadcast %cst_80 : f32 to vector<2x32xf32>
      %c0_81 = arith.constant 0 : index
      %c0_82 = arith.constant 0 : index
      %298 = vector.load %arg5[%c0_81, %c0_82] : memref<2x32xf32, #tpu.memory_space<vmem>>, vector<2x32xf32>
      tpu.vector_store %arg5[%c0_81, %c0_82], %297 {strides = array<i32>} : memref<2x32xf32, #tpu.memory_space<vmem>>, vector<2x32xf32>,
    } else {
    }
    %c0 = arith.constant 0 : index
    %c0_1 = arith.constant 0 : index
    %3 = vector.load %arg2[%c0, %c0_1] : memref<32x96xbf16, #tpu.memory_space<vmem>>, vector<32x96xbf16>
    %c0_2 = arith.constant 0 : index
    %c0_3 = arith.constant 0 : index
    %4 = vector.load %arg3[%c0_2, %c0_3] : memref<1x32xf32, #tpu.memory_space<vmem>>, vector<1x32xf32>
    %5 = vector.shape_cast %4 : vector<1x32xf32> to vector<1x32xf32>
    %6 = vector.broadcast %5 : vector<1x32xf32> to vector<2x32xf32>
    %c0_4 = arith.constant 0 : index
    %c0_5 = arith.constant 0 : index
    %7 = vector.load %arg5[%c0_4, %c0_5] : memref<2x32xf32, #tpu.memory_space<vmem>>, vector<2x32xf32>
    %8 = arith.truncf %7 : vector<2x32xf32> to vector<2x32xbf16>
    %cst = arith.constant dense<0.000000e+00> : vector<2x96xf32>
    %9 = tpu.matmul %8, %3, %cst {dimension_numbers = #tpu.dot_dimension_numbers<[1], [0], [0], [1], [0, 0, 1, 1], [], []>} : vector<2x32xbf16>, vector<32x96xbf16>, vector<2x96xf32> -> vector<2x96xf32>
    %c0_6 = arith.constant 0 : index
    %c0_7 = arith.constant 0 : index
    %c0_8 = arith.constant 0 : index
    %10 = vector.load %arg1[%c0_6, %c0_7, %c0_8] : memref<8x2x96xbf16, #tpu.memory_space<vmem>>, vector<1x2x96xbf16>
    %11 = vector.shape_cast %10 : vector<1x2x96xbf16> to vector<2x96xbf16>
    %12 = arith.extf %11 : vector<2x96xbf16> to vector<2x96xf32>
    %13 = vector.extract_strided_slice %12 {offsets = [0, 0], sizes = [2, 32], strides = [1, 1]} : vector<2x96xf32> to vector<2x32xf32>
    %14 = vector.extract_strided_slice %9 {offsets = [0, 0], sizes = [2, 32], strides = [1, 1]} : vector<2x96xf32> to vector<2x32xf32>
    %15 = arith.addf %13, %14 : vector<2x32xf32>
    %16 = arith.negf %15 : vector<2x32xf32>
    %17 = math.exp %16 : vector<2x32xf32>
    %cst_9 = arith.constant 1.000000e+00 : f32
    %18 = vector.broadcast %cst_9 : f32 to vector<2x32xf32>
    %19 = arith.addf %18, %17 : vector<2x32xf32>
    %20 = arith.divf %18, %19 : vector<2x32xf32>
    %21 = vector.extract_strided_slice %12 {offsets = [0, 32], sizes = [2, 32], strides = [1, 1]} : vector<2x96xf32> to vector<2x32xf32>
    %22 = vector.extract_strided_slice %9 {offsets = [0, 32], sizes = [2, 32], strides = [1, 1]} : vector<2x96xf32> to vector<2x32xf32>
    %23 = arith.addf %21, %22 : vector<2x32xf32>
    %24 = arith.negf %23 : vector<2x32xf32>
    %25 = math.exp %24 : vector<2x32xf32>
    %cst_10 = arith.constant 1.000000e+00 : f32
    %26 = vector.broadcast %cst_10 : f32 to vector<2x32xf32>
    %27 = arith.addf %26, %25 : vector<2x32xf32>
    %28 = arith.divf %26, %27 : vector<2x32xf32>
    %29 = vector.extract_strided_slice %12 {offsets = [0, 64], sizes = [2, 32], strides = [1, 1]} : vector<2x96xf32> to vector<2x32xf32>
    %30 = vector.extract_strided_slice %9 {offsets = [0, 64], sizes = [2, 32], strides = [1, 1]} : vector<2x96xf32> to vector<2x32xf32>
    %31 = arith.addf %30, %6 : vector<2x32xf32>
    %32 = arith.mulf %20, %31 : vector<2x32xf32>
    %33 = arith.addf %29, %32 : vector<2x32xf32>
    %34 = math.tanh %33 : vector<2x32xf32>
    %cst_11 = arith.constant 1.000000e+00 : f32
    %35 = vector.broadcast %cst_11 : f32 to vector<2x32xf32>
    %36 = arith.subf %35, %28 : vector<2x32xf32>
    %37 = arith.mulf %36, %34 : vector<2x32xf32>
    %38 = arith.mulf %28, %7 : vector<2x32xf32>
    %39 = arith.addf %37, %38 : vector<2x32xf32>
    %40 = arith.truncf %39 : vector<2x32xf32> to vector<2x32xbf16>
    %c0_12 = arith.constant 0 : index
    %c0_13 = arith.constant 0 : index
    %c0_14 = arith.constant 0 : index
    %41 = vector.load %arg4[%c0_12, %c0_13, %c0_14] : memref<2x8x32xbf16, #tpu.memory_space<vmem>>, vector<2x1x32xbf16>
    %42 = vector.shape_cast %41 : vector<2x1x32xbf16> to vector<2x32xbf16>
    %43 = vector.shape_cast %40 : vector<2x32xbf16> to vector<2x1x32xbf16>
    tpu.vector_store %arg4[%c0_12, %c0_13, %c0_14], %43 {strides = array<i32>} : memref<2x8x32xbf16, #tpu.memory_space<vmem>>, vector<2x1x32xbf16>,
    %44 = arith.truncf %39 : vector<2x32xf32> to vector<2x32xbf16>
    %cst_15 = arith.constant dense<0.000000e+00> : vector<2x96xf32>
    %45 = tpu.matmul %44, %3, %cst_15 {dimension_numbers = #tpu.dot_dimension_numbers<[1], [0], [0], [1], [0, 0, 1, 1], [], []>} : vector<2x32xbf16>, vector<32x96xbf16>, vector<2x96xf32> -> vector<2x96xf32>
    %c1 = arith.constant 1 : index
    %c0_16 = arith.constant 0 : index
    %c0_17 = arith.constant 0 : index
    %46 = vector.load %arg1[%c1, %c0_16, %c0_17] : memref<8x2x96xbf16, #tpu.memory_space<vmem>>, vector<1x2x96xbf16>
    %47 = vector.shape_cast %46 : vector<1x2x96xbf16> to vector<2x96xbf16>
    %48 = arith.extf %47 : vector<2x96xbf16> to vector<2x96xf32>
    %49 = vector.extract_strided_slice %48 {offsets = [0, 0], sizes = [2, 32], strides = [1, 1]} : vector<2x96xf32> to vector<2x32xf32>
    %50 = vector.extract_strided_slice %45 {offsets = [0, 0], sizes = [2, 32], strides = [1, 1]} : vector<2x96xf32> to vector<2x32xf32>
    %51 = arith.addf %49, %50 : vector<2x32xf32>
    %52 = arith.negf %51 : vector<2x32xf32>
    %53 = math.exp %52 : vector<2x32xf32>
    %cst_18 = arith.constant 1.000000e+00 : f32
    %54 = vector.broadcast %cst_18 : f32 to vector<2x32xf32>
    %55 = arith.addf %54, %53 : vector<2x32xf32>
    %56 = arith.divf %54, %55 : vector<2x32xf32>
    %57 = vector.extract_strided_slice %48 {offsets = [0, 32], sizes = [2, 32], strides = [1, 1]} : vector<2x96xf32> to vector<2x32xf32>
    %58 = vector.extract_strided_slice %45 {offsets = [0, 32], sizes = [2, 32], strides = [1, 1]} : vector<2x96xf32> to vector<2x32xf32>
    %59 = arith.addf %57, %58 : vector<2x32xf32>
    %60 = arith.negf %59 : vector<2x32xf32>
    %61 = math.exp %60 : vector<2x32xf32>
    %cst_19 = arith.constant 1.000000e+00 : f32
    %62 = vector.broadcast %cst_19 : f32 to vector<2x32xf32>
    %63 = arith.addf %62, %61 : vector<2x32xf32>
    %64 = arith.divf %62, %63 : vector<2x32xf32>
    %65 = vector.extract_strided_slice %48 {offsets = [0, 64], sizes = [2, 32], strides = [1, 1]} : vector<2x96xf32> to vector<2x32xf32>
    %66 = vector.extract_strided_slice %45 {offsets = [0, 64], sizes = [2, 32], strides = [1, 1]} : vector<2x96xf32> to vector<2x32xf32>
    %67 = arith.addf %66, %6 : vector<2x32xf32>
    %68 = arith.mulf %56, %67 : vector<2x32xf32>
    %69 = arith.addf %65, %68 : vector<2x32xf32>
    %70 = math.tanh %69 : vector<2x32xf32>
    %cst_20 = arith.constant 1.000000e+00 : f32
    %71 = vector.broadcast %cst_20 : f32 to vector<2x32xf32>
    %72 = arith.subf %71, %64 : vector<2x32xf32>
    %73 = arith.mulf %72, %70 : vector<2x32xf32>
    %74 = arith.mulf %64, %39 : vector<2x32xf32>
    %75 = arith.addf %73, %74 : vector<2x32xf32>
    %76 = arith.truncf %75 : vector<2x32xf32> to vector<2x32xbf16>
    %c0_21 = arith.constant 0 : index
    %c1_22 = arith.constant 1 : index
    %c0_23 = arith.constant 0 : index
    %77 = vector.load %arg4[%c0_21, %c1_22, %c0_23] : memref<2x8x32xbf16, #tpu.memory_space<vmem>>, vector<2x1x32xbf16>
    %78 = vector.shape_cast %77 : vector<2x1x32xbf16> to vector<2x32xbf16>
    %79 = vector.shape_cast %76 : vector<2x32xbf16> to vector<2x1x32xbf16>
    tpu.vector_store %arg4[%c0_21, %c1_22, %c0_23], %79 {strides = array<i32>} : memref<2x8x32xbf16, #tpu.memory_space<vmem>>, vector<2x1x32xbf16>,
    %80 = arith.truncf %75 : vector<2x32xf32> to vector<2x32xbf16>
    %cst_24 = arith.constant dense<0.000000e+00> : vector<2x96xf32>
    %81 = tpu.matmul %80, %3, %cst_24 {dimension_numbers = #tpu.dot_dimension_numbers<[1], [0], [0], [1], [0, 0, 1, 1], [], []>} : vector<2x32xbf16>, vector<32x96xbf16>, vector<2x96xf32> -> vector<2x96xf32>
    %c2 = arith.constant 2 : index
    %c0_25 = arith.constant 0 : index
    %c0_26 = arith.constant 0 : index
    %82 = vector.load %arg1[%c2, %c0_25, %c0_26] : memref<8x2x96xbf16, #tpu.memory_space<vmem>>, vector<1x2x96xbf16>
    %83 = vector.shape_cast %82 : vector<1x2x96xbf16> to vector<2x96xbf16>
    %84 = arith.extf %83 : vector<2x96xbf16> to vector<2x96xf32>
    %85 = vector.extract_strided_slice %84 {offsets = [0, 0], sizes = [2, 32], strides = [1, 1]} : vector<2x96xf32> to vector<2x32xf32>
    %86 = vector.extract_strided_slice %81 {offsets = [0, 0], sizes = [2, 32], strides = [1, 1]} : vector<2x96xf32> to vector<2x32xf32>
    %87 = arith.addf %85, %86 : vector<2x32xf32>
    %88 = arith.negf %87 : vector<2x32xf32>
    %89 = math.exp %88 : vector<2x32xf32>
    %cst_27 = arith.constant 1.000000e+00 : f32
    %90 = vector.broadcast %cst_27 : f32 to vector<2x32xf32>
    %91 = arith.addf %90, %89 : vector<2x32xf32>
    %92 = arith.divf %90, %91 : vector<2x32xf32>
    %93 = vector.extract_strided_slice %84 {offsets = [0, 32], sizes = [2, 32], strides = [1, 1]} : vector<2x96xf32> to vector<2x32xf32>
    %94 = vector.extract_strided_slice %81 {offsets = [0, 32], sizes = [2, 32], strides = [1, 1]} : vector<2x96xf32> to vector<2x32xf32>
    %95 = arith.addf %93, %94 : vector<2x32xf32>
    %96 = arith.negf %95 : vector<2x32xf32>
    %97 = math.exp %96 : vector<2x32xf32>
    %cst_28 = arith.constant 1.000000e+00 : f32
    %98 = vector.broadcast %cst_28 : f32 to vector<2x32xf32>
    %99 = arith.addf %98, %97 : vector<2x32xf32>
    %100 = arith.divf %98, %99 : vector<2x32xf32>
    %101 = vector.extract_strided_slice %84 {offsets = [0, 64], sizes = [2, 32], strides = [1, 1]} : vector<2x96xf32> to vector<2x32xf32>
    %102 = vector.extract_strided_slice %81 {offsets = [0, 64], sizes = [2, 32], strides = [1, 1]} : vector<2x96xf32> to vector<2x32xf32>
    %103 = arith.addf %102, %6 : vector<2x32xf32>
    %104 = arith.mulf %92, %103 : vector<2x32xf32>
    %105 = arith.addf %101, %104 : vector<2x32xf32>
    %106 = math.tanh %105 : vector<2x32xf32>
    %cst_29 = arith.constant 1.000000e+00 : f32
    %107 = vector.broadcast %cst_29 : f32 to vector<2x32xf32>
    %108 = arith.subf %107, %100 : vector<2x32xf32>
    %109 = arith.mulf %108, %106 : vector<2x32xf32>
    %110 = arith.mulf %100, %75 : vector<2x32xf32>
    %111 = arith.addf %109, %110 : vector<2x32xf32>
    %112 = arith.truncf %111 : vector<2x32xf32> to vector<2x32xbf16>
    %c0_30 = arith.constant 0 : index
    %c2_31 = arith.constant 2 : index
    %c0_32 = arith.constant 0 : index
    %113 = vector.load %arg4[%c0_30, %c2_31, %c0_32] : memref<2x8x32xbf16, #tpu.memory_space<vmem>>, vector<2x1x32xbf16>
    %114 = vector.shape_cast %113 : vector<2x1x32xbf16> to vector<2x32xbf16>
    %115 = vector.shape_cast %112 : vector<2x32xbf16> to vector<2x1x32xbf16>
    tpu.vector_store %arg4[%c0_30, %c2_31, %c0_32], %115 {strides = array<i32>} : memref<2x8x32xbf16, #tpu.memory_space<vmem>>, vector<2x1x32xbf16>,
    %116 = arith.truncf %111 : vector<2x32xf32> to vector<2x32xbf16>
    %cst_33 = arith.constant dense<0.000000e+00> : vector<2x96xf32>
    %117 = tpu.matmul %116, %3, %cst_33 {dimension_numbers = #tpu.dot_dimension_numbers<[1], [0], [0], [1], [0, 0, 1, 1], [], []>} : vector<2x32xbf16>, vector<32x96xbf16>, vector<2x96xf32> -> vector<2x96xf32>
    %c3 = arith.constant 3 : index
    %c0_34 = arith.constant 0 : index
    %c0_35 = arith.constant 0 : index
    %118 = vector.load %arg1[%c3, %c0_34, %c0_35] : memref<8x2x96xbf16, #tpu.memory_space<vmem>>, vector<1x2x96xbf16>
    %119 = vector.shape_cast %118 : vector<1x2x96xbf16> to vector<2x96xbf16>
    %120 = arith.extf %119 : vector<2x96xbf16> to vector<2x96xf32>
    %121 = vector.extract_strided_slice %120 {offsets = [0, 0], sizes = [2, 32], strides = [1, 1]} : vector<2x96xf32> to vector<2x32xf32>
    %122 = vector.extract_strided_slice %117 {offsets = [0, 0], sizes = [2, 32], strides = [1, 1]} : vector<2x96xf32> to vector<2x32xf32>
    %123 = arith.addf %121, %122 : vector<2x32xf32>
    %124 = arith.negf %123 : vector<2x32xf32>
    %125 = math.exp %124 : vector<2x32xf32>
    %cst_36 = arith.constant 1.000000e+00 : f32
    %126 = vector.broadcast %cst_36 : f32 to vector<2x32xf32>
    %127 = arith.addf %126, %125 : vector<2x32xf32>
    %128 = arith.divf %126, %127 : vector<2x32xf32>
    %129 = vector.extract_strided_slice %120 {offsets = [0, 32], sizes = [2, 32], strides = [1, 1]} : vector<2x96xf32> to vector<2x32xf32>
    %130 = vector.extract_strided_slice %117 {offsets = [0, 32], sizes = [2, 32], strides = [1, 1]} : vector<2x96xf32> to vector<2x32xf32>
    %131 = arith.addf %129, %130 : vector<2x32xf32>
    %132 = arith.negf %131 : vector<2x32xf32>
    %133 = math.exp %132 : vector<2x32xf32>
    %cst_37 = arith.constant 1.000000e+00 : f32
    %134 = vector.broadcast %cst_37 : f32 to vector<2x32xf32>
    %135 = arith.addf %134, %133 : vector<2x32xf32>
    %136 = arith.divf %134, %135 : vector<2x32xf32>
    %137 = vector.extract_strided_slice %120 {offsets = [0, 64], sizes = [2, 32], strides = [1, 1]} : vector<2x96xf32> to vector<2x32xf32>
    %138 = vector.extract_strided_slice %117 {offsets = [0, 64], sizes = [2, 32], strides = [1, 1]} : vector<2x96xf32> to vector<2x32xf32>
    %139 = arith.addf %138, %6 : vector<2x32xf32>
    %140 = arith.mulf %128, %139 : vector<2x32xf32>
    %141 = arith.addf %137, %140 : vector<2x32xf32>
    %142 = math.tanh %141 : vector<2x32xf32>
    %cst_38 = arith.constant 1.000000e+00 : f32
    %143 = vector.broadcast %cst_38 : f32 to vector<2x32xf32>
    %144 = arith.subf %143, %136 : vector<2x32xf32>
    %145 = arith.mulf %144, %142 : vector<2x32xf32>
    %146 = arith.mulf %136, %111 : vector<2x32xf32>
    %147 = arith.addf %145, %146 : vector<2x32xf32>
    %148 = arith.truncf %147 : vector<2x32xf32> to vector<2x32xbf16>
    %c0_39 = arith.constant 0 : index
    %c3_40 = arith.constant 3 : index
    %c0_41 = arith.constant 0 : index
    %149 = vector.load %arg4[%c0_39, %c3_40, %c0_41] : memref<2x8x32xbf16, #tpu.memory_space<vmem>>, vector<2x1x32xbf16>
    %150 = vector.shape_cast %149 : vector<2x1x32xbf16> to vector<2x32xbf16>
    %151 = vector.shape_cast %148 : vector<2x32xbf16> to vector<2x1x32xbf16>
    tpu.vector_store %arg4[%c0_39, %c3_40, %c0_41], %151 {strides = array<i32>} : memref<2x8x32xbf16, #tpu.memory_space<vmem>>, vector<2x1x32xbf16>,
    %152 = arith.truncf %147 : vector<2x32xf32> to vector<2x32xbf16>
    %cst_42 = arith.constant dense<0.000000e+00> : vector<2x96xf32>
    %153 = tpu.matmul %152, %3, %cst_42 {dimension_numbers = #tpu.dot_dimension_numbers<[1], [0], [0], [1], [0, 0, 1, 1], [], []>} : vector<2x32xbf16>, vector<32x96xbf16>, vector<2x96xf32> -> vector<2x96xf32>
    %c4 = arith.constant 4 : index
    %c0_43 = arith.constant 0 : index
    %c0_44 = arith.constant 0 : index
    %154 = vector.load %arg1[%c4, %c0_43, %c0_44] : memref<8x2x96xbf16, #tpu.memory_space<vmem>>, vector<1x2x96xbf16>
    %155 = vector.shape_cast %154 : vector<1x2x96xbf16> to vector<2x96xbf16>
    %156 = arith.extf %155 : vector<2x96xbf16> to vector<2x96xf32>
    %157 = vector.extract_strided_slice %156 {offsets = [0, 0], sizes = [2, 32], strides = [1, 1]} : vector<2x96xf32> to vector<2x32xf32>
    %158 = vector.extract_strided_slice %153 {offsets = [0, 0], sizes = [2, 32], strides = [1, 1]} : vector<2x96xf32> to vector<2x32xf32>
    %159 = arith.addf %157, %158 : vector<2x32xf32>
    %160 = arith.negf %159 : vector<2x32xf32>
    %161 = math.exp %160 : vector<2x32xf32>
    %cst_45 = arith.constant 1.000000e+00 : f32
    %162 = vector.broadcast %cst_45 : f32 to vector<2x32xf32>
    %163 = arith.addf %162, %161 : vector<2x32xf32>
    %164 = arith.divf %162, %163 : vector<2x32xf32>
    %165 = vector.extract_strided_slice %156 {offsets = [0, 32], sizes = [2, 32], strides = [1, 1]} : vector<2x96xf32> to vector<2x32xf32>
    %166 = vector.extract_strided_slice %153 {offsets = [0, 32], sizes = [2, 32], strides = [1, 1]} : vector<2x96xf32> to vector<2x32xf32>
    %167 = arith.addf %165, %166 : vector<2x32xf32>
    %168 = arith.negf %167 : vector<2x32xf32>
    %169 = math.exp %168 : vector<2x32xf32>
    %cst_46 = arith.constant 1.000000e+00 : f32
    %170 = vector.broadcast %cst_46 : f32 to vector<2x32xf32>
    %171 = arith.addf %170, %169 : vector<2x32xf32>
    %172 = arith.divf %170, %171 : vector<2x32xf32>
    %173 = vector.extract_strided_slice %156 {offsets = [0, 64], sizes = [2, 32], strides = [1, 1]} : vector<2x96xf32> to vector<2x32xf32>
    %174 = vector.extract_strided_slice %153 {offsets = [0, 64], sizes = [2, 32], strides = [1, 1]} : vector<2x96xf32> to vector<2x32xf32>
    %175 = arith.addf %174, %6 : vector<2x32xf32>
    %176 = arith.mulf %164, %175 : vector<2x32xf32>
    %177 = arith.addf %173, %176 : vector<2x32xf32>
    %178 = math.tanh %177 : vector<2x32xf32>
    %cst_47 = arith.constant 1.000000e+00 : f32
    %179 = vector.broadcast %cst_47 : f32 to vector<2x32xf32>
    %180 = arith.subf %179, %172 : vector<2x32xf32>
    %181 = arith.mulf %180, %178 : vector<2x32xf32>
    %182 = arith.mulf %172, %147 : vector<2x32xf32>
    %183 = arith.addf %181, %182 : vector<2x32xf32>
    %184 = arith.truncf %183 : vector<2x32xf32> to vector<2x32xbf16>
    %c0_48 = arith.constant 0 : index
    %c4_49 = arith.constant 4 : index
    %c0_50 = arith.constant 0 : index
    %185 = vector.load %arg4[%c0_48, %c4_49, %c0_50] : memref<2x8x32xbf16, #tpu.memory_space<vmem>>, vector<2x1x32xbf16>
    %186 = vector.shape_cast %185 : vector<2x1x32xbf16> to vector<2x32xbf16>
    %187 = vector.shape_cast %184 : vector<2x32xbf16> to vector<2x1x32xbf16>
    tpu.vector_store %arg4[%c0_48, %c4_49, %c0_50], %187 {strides = array<i32>} : memref<2x8x32xbf16, #tpu.memory_space<vmem>>, vector<2x1x32xbf16>,
    %188 = arith.truncf %183 : vector<2x32xf32> to vector<2x32xbf16>
    %cst_51 = arith.constant dense<0.000000e+00> : vector<2x96xf32>
    %189 = tpu.matmul %188, %3, %cst_51 {dimension_numbers = #tpu.dot_dimension_numbers<[1], [0], [0], [1], [0, 0, 1, 1], [], []>} : vector<2x32xbf16>, vector<32x96xbf16>, vector<2x96xf32> -> vector<2x96xf32>
    %c5 = arith.constant 5 : index
    %c0_52 = arith.constant 0 : index
    %c0_53 = arith.constant 0 : index
    %190 = vector.load %arg1[%c5, %c0_52, %c0_53] : memref<8x2x96xbf16, #tpu.memory_space<vmem>>, vector<1x2x96xbf16>
    %191 = vector.shape_cast %190 : vector<1x2x96xbf16> to vector<2x96xbf16>
    %192 = arith.extf %191 : vector<2x96xbf16> to vector<2x96xf32>
    %193 = vector.extract_strided_slice %192 {offsets = [0, 0], sizes = [2, 32], strides = [1, 1]} : vector<2x96xf32> to vector<2x32xf32>
    %194 = vector.extract_strided_slice %189 {offsets = [0, 0], sizes = [2, 32], strides = [1, 1]} : vector<2x96xf32> to vector<2x32xf32>
    %195 = arith.addf %193, %194 : vector<2x32xf32>
    %196 = arith.negf %195 : vector<2x32xf32>
    %197 = math.exp %196 : vector<2x32xf32>
    %cst_54 = arith.constant 1.000000e+00 : f32
    %198 = vector.broadcast %cst_54 : f32 to vector<2x32xf32>
    %199 = arith.addf %198, %197 : vector<2x32xf32>
    %200 = arith.divf %198, %199 : vector<2x32xf32>
    %201 = vector.extract_strided_slice %192 {offsets = [0, 32], sizes = [2, 32], strides = [1, 1]} : vector<2x96xf32> to vector<2x32xf32>
    %202 = vector.extract_strided_slice %189 {offsets = [0, 32], sizes = [2, 32], strides = [1, 1]} : vector<2x96xf32> to vector<2x32xf32>
    %203 = arith.addf %201, %202 : vector<2x32xf32>
    %204 = arith.negf %203 : vector<2x32xf32>
    %205 = math.exp %204 : vector<2x32xf32>
    %cst_55 = arith.constant 1.000000e+00 : f32
    %206 = vector.broadcast %cst_55 : f32 to vector<2x32xf32>
    %207 = arith.addf %206, %205 : vector<2x32xf32>
    %208 = arith.divf %206, %207 : vector<2x32xf32>
    %209 = vector.extract_strided_slice %192 {offsets = [0, 64], sizes = [2, 32], strides = [1, 1]} : vector<2x96xf32> to vector<2x32xf32>
    %210 = vector.extract_strided_slice %189 {offsets = [0, 64], sizes = [2, 32], strides = [1, 1]} : vector<2x96xf32> to vector<2x32xf32>
    %211 = arith.addf %210, %6 : vector<2x32xf32>
    %212 = arith.mulf %200, %211 : vector<2x32xf32>
    %213 = arith.addf %209, %212 : vector<2x32xf32>
    %214 = math.tanh %213 : vector<2x32xf32>
    %cst_56 = arith.constant 1.000000e+00 : f32
    %215 = vector.broadcast %cst_56 : f32 to vector<2x32xf32>
    %216 = arith.subf %215, %208 : vector<2x32xf32>
    %217 = arith.mulf %216, %214 : vector<2x32xf32>
    %218 = arith.mulf %208, %183 : vector<2x32xf32>
    %219 = arith.addf %217, %218 : vector<2x32xf32>
    %220 = arith.truncf %219 : vector<2x32xf32> to vector<2x32xbf16>
    %c0_57 = arith.constant 0 : index
    %c5_58 = arith.constant 5 : index
    %c0_59 = arith.constant 0 : index
    %221 = vector.load %arg4[%c0_57, %c5_58, %c0_59] : memref<2x8x32xbf16, #tpu.memory_space<vmem>>, vector<2x1x32xbf16>
    %222 = vector.shape_cast %221 : vector<2x1x32xbf16> to vector<2x32xbf16>
    %223 = vector.shape_cast %220 : vector<2x32xbf16> to vector<2x1x32xbf16>
    tpu.vector_store %arg4[%c0_57, %c5_58, %c0_59], %223 {strides = array<i32>} : memref<2x8x32xbf16, #tpu.memory_space<vmem>>, vector<2x1x32xbf16>,
    %224 = arith.truncf %219 : vector<2x32xf32> to vector<2x32xbf16>
    %cst_60 = arith.constant dense<0.000000e+00> : vector<2x96xf32>
    %225 = tpu.matmul %224, %3, %cst_60 {dimension_numbers = #tpu.dot_dimension_numbers<[1], [0], [0], [1], [0, 0, 1, 1], [], []>} : vector<2x32xbf16>, vector<32x96xbf16>, vector<2x96xf32> -> vector<2x96xf32>
    %c6 = arith.constant 6 : index
    %c0_61 = arith.constant 0 : index
    %c0_62 = arith.constant 0 : index
    %226 = vector.load %arg1[%c6, %c0_61, %c0_62] : memref<8x2x96xbf16, #tpu.memory_space<vmem>>, vector<1x2x96xbf16>
    %227 = vector.shape_cast %226 : vector<1x2x96xbf16> to vector<2x96xbf16>
    %228 = arith.extf %227 : vector<2x96xbf16> to vector<2x96xf32>
    %229 = vector.extract_strided_slice %228 {offsets = [0, 0], sizes = [2, 32], strides = [1, 1]} : vector<2x96xf32> to vector<2x32xf32>
    %230 = vector.extract_strided_slice %225 {offsets = [0, 0], sizes = [2, 32], strides = [1, 1]} : vector<2x96xf32> to vector<2x32xf32>
    %231 = arith.addf %229, %230 : vector<2x32xf32>
    %232 = arith.negf %231 : vector<2x32xf32>
    %233 = math.exp %232 : vector<2x32xf32>
    %cst_63 = arith.constant 1.000000e+00 : f32
    %234 = vector.broadcast %cst_63 : f32 to vector<2x32xf32>
    %235 = arith.addf %234, %233 : vector<2x32xf32>
    %236 = arith.divf %234, %235 : vector<2x32xf32>
    %237 = vector.extract_strided_slice %228 {offsets = [0, 32], sizes = [2, 32], strides = [1, 1]} : vector<2x96xf32> to vector<2x32xf32>
    %238 = vector.extract_strided_slice %225 {offsets = [0, 32], sizes = [2, 32], strides = [1, 1]} : vector<2x96xf32> to vector<2x32xf32>
    %239 = arith.addf %237, %238 : vector<2x32xf32>
    %240 = arith.negf %239 : vector<2x32xf32>
    %241 = math.exp %240 : vector<2x32xf32>
    %cst_64 = arith.constant 1.000000e+00 : f32
    %242 = vector.broadcast %cst_64 : f32 to vector<2x32xf32>
    %243 = arith.addf %242, %241 : vector<2x32xf32>
    %244 = arith.divf %242, %243 : vector<2x32xf32>
    %245 = vector.extract_strided_slice %228 {offsets = [0, 64], sizes = [2, 32], strides = [1, 1]} : vector<2x96xf32> to vector<2x32xf32>
    %246 = vector.extract_strided_slice %225 {offsets = [0, 64], sizes = [2, 32], strides = [1, 1]} : vector<2x96xf32> to vector<2x32xf32>
    %247 = arith.addf %246, %6 : vector<2x32xf32>
    %248 = arith.mulf %236, %247 : vector<2x32xf32>
    %249 = arith.addf %245, %248 : vector<2x32xf32>
    %250 = math.tanh %249 : vector<2x32xf32>
    %cst_65 = arith.constant 1.000000e+00 : f32
    %251 = vector.broadcast %cst_65 : f32 to vector<2x32xf32>
    %252 = arith.subf %251, %244 : vector<2x32xf32>
    %253 = arith.mulf %252, %250 : vector<2x32xf32>
    %254 = arith.mulf %244, %219 : vector<2x32xf32>
    %255 = arith.addf %253, %254 : vector<2x32xf32>
    %256 = arith.truncf %255 : vector<2x32xf32> to vector<2x32xbf16>
    %c0_66 = arith.constant 0 : index
    %c6_67 = arith.constant 6 : index
    %c0_68 = arith.constant 0 : index
    %257 = vector.load %arg4[%c0_66, %c6_67, %c0_68] : memref<2x8x32xbf16, #tpu.memory_space<vmem>>, vector<2x1x32xbf16>
    %258 = vector.shape_cast %257 : vector<2x1x32xbf16> to vector<2x32xbf16>
    %259 = vector.shape_cast %256 : vector<2x32xbf16> to vector<2x1x32xbf16>
    tpu.vector_store %arg4[%c0_66, %c6_67, %c0_68], %259 {strides = array<i32>} : memref<2x8x32xbf16, #tpu.memory_space<vmem>>, vector<2x1x32xbf16>,
    %260 = arith.truncf %255 : vector<2x32xf32> to vector<2x32xbf16>
    %cst_69 = arith.constant dense<0.000000e+00> : vector<2x96xf32>
    %261 = tpu.matmul %260, %3, %cst_69 {dimension_numbers = #tpu.dot_dimension_numbers<[1], [0], [0], [1], [0, 0, 1, 1], [], []>} : vector<2x32xbf16>, vector<32x96xbf16>, vector<2x96xf32> -> vector<2x96xf32>
    %c7 = arith.constant 7 : index
    %c0_70 = arith.constant 0 : index
    %c0_71 = arith.constant 0 : index
    %262 = vector.load %arg1[%c7, %c0_70, %c0_71] : memref<8x2x96xbf16, #tpu.memory_space<vmem>>, vector<1x2x96xbf16>
    %263 = vector.shape_cast %262 : vector<1x2x96xbf16> to vector<2x96xbf16>
    %264 = arith.extf %263 : vector<2x96xbf16> to vector<2x96xf32>
    %265 = vector.extract_strided_slice %264 {offsets = [0, 0], sizes = [2, 32], strides = [1, 1]} : vector<2x96xf32> to vector<2x32xf32>
    %266 = vector.extract_strided_slice %261 {offsets = [0, 0], sizes = [2, 32], strides = [1, 1]} : vector<2x96xf32> to vector<2x32xf32>
    %267 = arith.addf %265, %266 : vector<2x32xf32>
    %268 = arith.negf %267 : vector<2x32xf32>
    %269 = math.exp %268 : vector<2x32xf32>
    %cst_72 = arith.constant 1.000000e+00 : f32
    %270 = vector.broadcast %cst_72 : f32 to vector<2x32xf32>
    %271 = arith.addf %270, %269 : vector<2x32xf32>
    %272 = arith.divf %270, %271 : vector<2x32xf32>
    %273 = vector.extract_strided_slice %264 {offsets = [0, 32], sizes = [2, 32], strides = [1, 1]} : vector<2x96xf32> to vector<2x32xf32>
    %274 = vector.extract_strided_slice %261 {offsets = [0, 32], sizes = [2, 32], strides = [1, 1]} : vector<2x96xf32> to vector<2x32xf32>
    %275 = arith.addf %273, %274 : vector<2x32xf32>
    %276 = arith.negf %275 : vector<2x32xf32>
    %277 = math.exp %276 : vector<2x32xf32>
    %cst_73 = arith.constant 1.000000e+00 : f32
    %278 = vector.broadcast %cst_73 : f32 to vector<2x32xf32>
    %279 = arith.addf %278, %277 : vector<2x32xf32>
    %280 = arith.divf %278, %279 : vector<2x32xf32>
    %281 = vector.extract_strided_slice %264 {offsets = [0, 64], sizes = [2, 32], strides = [1, 1]} : vector<2x96xf32> to vector<2x32xf32>
    %282 = vector.extract_strided_slice %261 {offsets = [0, 64], sizes = [2, 32], strides = [1, 1]} : vector<2x96xf32> to vector<2x32xf32>
    %283 = arith.addf %282, %6 : vector<2x32xf32>
    %284 = arith.mulf %272, %283 : vector<2x32xf32>
    %285 = arith.addf %281, %284 : vector<2x32xf32>
    %286 = math.tanh %285 : vector<2x32xf32>
    %cst_74 = arith.constant 1.000000e+00 : f32
    %287 = vector.broadcast %cst_74 : f32 to vector<2x32xf32>
    %288 = arith.subf %287, %280 : vector<2x32xf32>
    %289 = arith.mulf %288, %286 : vector<2x32xf32>
    %290 = arith.mulf %280, %255 : vector<2x32xf32>
    %291 = arith.addf %289, %290 : vector<2x32xf32>
    %292 = arith.truncf %291 : vector<2x32xf32> to vector<2x32xbf16>
    %c0_75 = arith.constant 0 : index
    %c7_76 = arith.constant 7 : index
    %c0_77 = arith.constant 0 : index
    %293 = vector.load %arg4[%c0_75, %c7_76, %c0_77] : memref<2x8x32xbf16, #tpu.memory_space<vmem>>, vector<2x1x32xbf16>
    %294 = vector.shape_cast %293 : vector<2x1x32xbf16> to vector<2x32xbf16>
    %295 = vector.shape_cast %292 : vector<2x32xbf16> to vector<2x1x32xbf16>
    tpu.vector_store %arg4[%c0_75, %c7_76, %c0_77], %295 {strides = array<i32>} : memref<2x8x32xbf16, #tpu.memory_space<vmem>>, vector<2x1x32xbf16>,
    %c0_78 = arith.constant 0 : index
    %c0_79 = arith.constant 0 : index
    %296 = vector.load %arg5[%c0_78, %c0_79] : memref<2x32xf32, #tpu.memory_space<vmem>>, vector<2x32xf32>
    tpu.vector_store %arg5[%c0_78, %c0_79], %291 {strides = array<i32>} : memref<2x32xf32, #tpu.memory_space<vmem>>, vector<2x32xf32>,
    return
  }
  func.func @transform_0(%arg0: i32) -> (i32, i32, i32) {
    %c0_i32 = arith.constant 0 : i32
    %c0_i32_0 = arith.constant 0 : i32
    %c0_i32_1 = arith.constant 0 : i32
    return %arg0, %c0_i32, %c0_i32_0 : i32, i32, i32
  }
  func.func @transform_1(%arg0: i32) -> (i32, i32) {
    %c0_i32 = arith.constant 0 : i32
    %c0_i32_0 = arith.constant 0 : i32
    %c0_i32_1 = arith.constant 0 : i32
    return %c0_i32, %c0_i32_0 : i32, i32
  }
  func.func @transform_2(%arg0: i32) -> (i32, i32) {
    %c0_i32 = arith.constant 0 : i32
    %c0_i32_0 = arith.constant 0 : i32
    %c0_i32_1 = arith.constant 0 : i32
    return %c0_i32, %c0_i32_0 : i32, i32
  }
  func.func @transform_3(%arg0: i32) -> (i32, i32, i32) {
    %c0_i32 = arith.constant 0 : i32
    %c0_i32_0 = arith.constant 0 : i32
    %c0_i32_1 = arith.constant 0 : i32
    return %c0_i32, %arg0, %c0_i32_0 : i32, i32, i32
  }
}

module attributes {stable_mosaic.version = 11 : i64} {
  func.func @gi_proj_kernel(%arg0: i32, %arg1: memref<16x16xf32, #tpu.memory_space<vmem>>, %arg2: memref<16x96xbf16, #tpu.memory_space<vmem>>, %arg3: memref<1x96xf32, #tpu.memory_space<vmem>>, %arg4: memref<16x96xbf16, #tpu.memory_space<vmem>>) attributes {dimension_semantics = [#tpu.dimension_semantics<parallel>], iteration_bounds = array<i64: 1>, scalar_prefetch = 0 : i64, scratch_operands = 0 : i64, tpu.core_type = #tpu.core_type<tc>, window_params = [{transform_indices = @transform_0, window_bounds = array<i64: 16, 16>}, {pipeline_mode = #tpu.pipeline_mode<synchronous>, transform_indices = @transform_1, window_bounds = array<i64: 16, 96>}, {pipeline_mode = #tpu.pipeline_mode<synchronous>, transform_indices = @transform_2, window_bounds = array<i64: 1, 96>}, {transform_indices = @transform_3, window_bounds = array<i64: 16, 96>}]} {
    %c0 = arith.constant 0 : index
    %c0_0 = arith.constant 0 : index
    %0 = vector.load %arg1[%c0, %c0_0] : memref<16x16xf32, #tpu.memory_space<vmem>>, vector<16x16xf32>
    %1 = arith.truncf %0 : vector<16x16xf32> to vector<16x16xbf16>
    %c0_1 = arith.constant 0 : index
    %c0_2 = arith.constant 0 : index
    %2 = vector.load %arg2[%c0_1, %c0_2] : memref<16x96xbf16, #tpu.memory_space<vmem>>, vector<16x96xbf16>
    %cst = arith.constant dense<0.000000e+00> : vector<16x96xf32>
    %3 = tpu.matmul %1, %2, %cst {dimension_numbers = #tpu.dot_dimension_numbers<[1], [0], [0], [1], [0, 0, 1, 1], [], []>} : vector<16x16xbf16>, vector<16x96xbf16>, vector<16x96xf32> -> vector<16x96xf32>
    %c0_3 = arith.constant 0 : index
    %c0_4 = arith.constant 0 : index
    %4 = vector.load %arg3[%c0_3, %c0_4] : memref<1x96xf32, #tpu.memory_space<vmem>>, vector<1x96xf32>
    %5 = vector.broadcast %4 : vector<1x96xf32> to vector<16x96xf32>
    %6 = arith.addf %3, %5 : vector<16x96xf32>
    %7 = arith.truncf %6 : vector<16x96xf32> to vector<16x96xbf16>
    %c0_5 = arith.constant 0 : index
    %c0_6 = arith.constant 0 : index
    %8 = vector.load %arg4[%c0_5, %c0_6] : memref<16x96xbf16, #tpu.memory_space<vmem>>, vector<16x96xbf16>
    tpu.vector_store %arg4[%c0_5, %c0_6], %7 {strides = array<i32>} : memref<16x96xbf16, #tpu.memory_space<vmem>>, vector<16x96xbf16>,
    return
  }
  func.func @transform_0(%arg0: i32) -> (i32, i32) {
    %c0_i32 = arith.constant 0 : i32
    %c0_i32_0 = arith.constant 0 : i32
    return %arg0, %c0_i32 : i32, i32
  }
  func.func @transform_1(%arg0: i32) -> (i32, i32) {
    %c0_i32 = arith.constant 0 : i32
    %c0_i32_0 = arith.constant 0 : i32
    %c0_i32_1 = arith.constant 0 : i32
    return %c0_i32, %c0_i32_0 : i32, i32
  }
  func.func @transform_2(%arg0: i32) -> (i32, i32) {
    %c0_i32 = arith.constant 0 : i32
    %c0_i32_0 = arith.constant 0 : i32
    %c0_i32_1 = arith.constant 0 : i32
    return %c0_i32, %c0_i32_0 : i32, i32
  }
  func.func @transform_3(%arg0: i32) -> (i32, i32) {
    %c0_i32 = arith.constant 0 : i32
    %c0_i32_0 = arith.constant 0 : i32
    return %arg0, %c0_i32 : i32, i32
  }
}

</mosaic_0001>

<llo_original>
// kernel: svae_forward.3
$region0: #{svae_forward.3}
  #allocation0 [shape = 'u32[]', space=smem, size = 0x4, offset = 0x4, fixed_abs, tag = 'smem constant byte address 0x4 - core index']
  #allocation1 [shape = 'u32[144,128]{1,0:T(1,128)}', space=vmem, size = 0x12000, scoped, tag = 'internal scratch']
  %s0 = inlined_call_operand.vmem [shape: f32[16,16], index: 0, kind: input, shape index: {}]
  %s1 = inlined_call_operand.vmem [shape: bf16[16,96], index: 1, kind: input, shape index: {}]
  %s2 = inlined_call_operand.vmem [shape: f32[1,96], index: 2, kind: input, shape index: {}]
  %s3 = inlined_call_operand.vmem [shape: bf16[16,96], index: 3, kind: output, shape index: {}]
  %s4 = sld [smem:[#allocation0]]
  $region22: #{svae_forward.3} parent=0
    _
  %s6 = ssub.s32 1, %s4
  %s7 = scalar_select 0, %s6, %s4
  // Predicated region
  $region2: #{svae_forward.3} parent=0 // pred_check
    _
  $region3: #{svae_forward.3} parent=0 // pred_check_branch
    %9 = sbr.rel (0) target = $region5
  $region4: #{svae_forward.3} parent=0 // pred_region
    _
  $region5: #{svae_forward.3} parent=0 // pred_fallthru
    _
  // Predicated region
  $region6: #{svae_forward.3} parent=0 // pred_check
    _
  $region7: #{svae_forward.3} parent=0 // pred_check_branch
    %11 = sbr.rel (0) target = $region9
  $region8: #{svae_forward.3} parent=0 // pred_region
    _
  $region9: #{svae_forward.3} parent=0 // pred_fallthru
    _
  // Predicated region
  $region10: #{svae_forward.3} parent=0 // pred_check
    _
  $region11: #{svae_forward.3} parent=0 // pred_check_branch
    %13 = sbr.rel (0) target = $region13
  $region12: #{svae_forward.3} parent=0 // pred_region
    _
  $region13: #{svae_forward.3} parent=0 // pred_fallthru
    _
  %v15 = vld [vmem:[%s0] sm:$0xff]
  %v16 = vld [vmem:[%s0 + $0x8] sm:$0xff]
  %v17 = vpack.c.bf16 %v16, %v15
  %v18 = vld [vmem:[%s1] sm:$0xf]
  %v19 = vld [vmem:[%s1 + $0x4] sm:$0xf]
  %v20 = vld [vmem:[%s2] sm:$0x1]
  %v22 = vlaneseq
  %v23 = vshrl.u32 %v22, 7
  %v24 = vsub.s32 0, %v23
  %v25 = vrot.slane %v20, %v24
  %v29 = vunpack.c.l.b16 %v18
  %v30 = vunpack.c.l.b16 %v19
  %v31 = vpack.c.b16 %v30, %v29
  %vm33 = vcmask 130048
  %v35 = vsel %vm33, %v17, 0
  %37 = vmatprep.subr.bf16.mxu0 0
  %38 = vmatpush1.bf16.msra.mxu0 %v31
  %39 = vmatprep.subr.bf16.mxu0 0
  %40 = vmatpush1.bf16.msra.mxu0 0
  %41 = vmatprep.subr.bf16.mxu0 0
  %42 = vmatpush1.bf16.msra.mxu0 0
  %43 = vmatprep.subr.bf16.mxu0 0
  %44 = vmatpush1.bf16.msra.mxu0 0
  %45 = vmatprep.subr.bf16.mxu0 0
  %46 = vmatpush1.bf16.msra.mxu0 0
  %47 = vmatprep.subr.bf16.mxu0 0
  %48 = vmatpush1.bf16.msra.mxu0 0
  %49 = vmatprep.subr.bf16.mxu0 0
  %50 = vmatpush1.bf16.msra.mxu0 0
  %51 = vmatprep.subr.bf16.mxu0 0
  %52 = vmatpush1.bf16.msra.mxu0 0
  %53 = vmatprep.subr.bf16.mxu0 0
  %54 = vmatpush1.bf16.msra.mxu0 0
  %55 = vmatprep.subr.bf16.mxu0 0
  %56 = vmatpush1.bf16.msra.mxu0 0
  %57 = vmatprep.subr.bf16.mxu0 0
  %58 = vmatpush1.bf16.msra.mxu0 0
  %59 = vmatprep.subr.bf16.mxu0 0
  %60 = vmatpush1.bf16.msra.mxu0 0
  %61 = vmatprep.subr.bf16.mxu0 0
  %62 = vmatpush1.bf16.msra.mxu0 0
  %63 = vmatprep.subr.bf16.mxu0 0
  %64 = vmatpush1.bf16.msra.mxu0 0
  %65 = vmatprep.subr.bf16.mxu0 0
  %66 = vmatpush1.bf16.msra.mxu0 0
  %67 = vmatprep.subr.bf16.mxu0 0
  %68 = vmatpush1.bf16.msra.mxu0 0
  %69 = vmatprep.mubr.bf16.mxu0 0
  %70 = vmatmul.mubr.bf16.gmra.mrb[0].mxu0 %v35
  %v71 = vpop.f32.mrb[0].mxu0
  %v72 = vadd.f32 %v25, %v71
  %v73 = vpop.f32.mrb[0].mxu0
  %v74 = vpop.f32.mrb[0].mxu0
  %v75 = vadd.f32 %v25, %v74
  %v76 = vpop.f32.mrb[0].mxu0
  %77 = vdwg.mxu0
  %v78 = vpack.c.bf16 %v75, %v72
  %v80 = vunpack.c.l.b16 %v78
  %v81 = vunpack.c.h.b16 %v78
  %v82 = vpack.c.b16 %v80, %v80
  %v83 = vpack.c.b16 %v81, %v81
  %vm86 = vcmask 781312
  %87 = vst.msk [vmem:[%s3] sm:$0xf] %vm86, %v82
  %88 = vst.msk [vmem:[%s3 + $0x4] sm:$0xf] %vm86, %v83
  // Predicated region
  $region14: #{svae_forward.3} parent=0 // pred_check
    _
  $region15: #{svae_forward.3} parent=0 // pred_check_branch
    %90 = sbr.rel (0) target = $region17
  $region16: #{svae_forward.3} parent=0 // pred_region
    _
  $region17: #{svae_forward.3} parent=0 // pred_fallthru
    _
  // Predicated region
  $region18: #{svae_forward.3} parent=0 // pred_check
    _
  $region19: #{svae_forward.3} parent=0 // pred_check_branch
    %92 = sbr.rel (0) target = $region21
  $region20: #{svae_forward.3} parent=0 // pred_region
    _
  $region21: #{svae_forward.3} parent=0 // pred_fallthru
    _

// kernel: svae_forward.5
$region0: #{svae_forward.5}
  #allocation0 [shape = 'u32[]', space=smem, size = 0x4, offset = 0x4, fixed_abs, tag = 'smem constant byte address 0x4 - core index']
  #allocation1 [shape = 'u32[144,128]{1,0:T(1,128)}', space=vmem, size = 0x12000, scoped, tag = 'internal scratch']
  #allocation2 [shape = 'bf16[16,32]{1,0:T(16,128)(2,1)}', space=vmem, size = 0x1000, scoped, tag = 'scratch operand']
  %s0 = inlined_call_operand.vmem [shape: bf16[16,32], index: 0, kind: input, shape index: {}]
  %s1 = inlined_call_operand.vmem [shape: bf16[32,32], index: 1, kind: input, shape index: {}]
  %s2 = inlined_call_operand.vmem [shape: f32[1,32], index: 2, kind: input, shape index: {}]
  %s3 = inlined_call_operand.vmem [shape: bf16[32,32], index: 3, kind: input, shape index: {}]
  %s4 = inlined_call_operand.vmem [shape: f32[1,32], index: 4, kind: input, shape index: {}]
  %s5 = inlined_call_operand.vmem [shape: f32[16,16], index: 5, kind: input, shape index: {}]
  %s6 = inlined_call_operand.vmem [shape: bf16[16,32], index: 6, kind: input, shape index: {}]
  %s7 = inlined_call_operand.vmem [shape: f32[1,32], index: 7, kind: input, shape index: {}]
  %s8 = inlined_call_operand.vmem [shape: bf16[32,128], index: 8, kind: input, shape index: {}]
  %s9 = inlined_call_operand.vmem [shape: f32[1,128], index: 9, kind: input, shape index: {}]
  %s10 = inlined_call_operand.vmem [shape: f32[16,128], index: 10, kind: output, shape index: {0}]
  %s11 = inlined_call_operand.hbm [shape: f32[16,16], index: 11, kind: output, shape index: {1}]
  %s12 = inlined_call_operand.hbm [shape: f32[16,16], index: 12, kind: output, shape index: {2}]
  %13 = xla_tuple %s10, %s11, %s12
  %s14 = sld [smem:[#allocation0]]
  $region70: #{svae_forward.5} parent=0
    _
  %s16 = ssub.s32 1, %s14
  %s17 = scalar_select 0, %s16, %s14
  $region1: #{svae_forward.5} parent=0
    #allocation3 [shape = 'u8[8192]{0}', space=vmem, size = 0x2000, scoped, tag = 'output window, operand 1, single buffered']
    #allocation4 [shape = 's32[1]{0}', space=sflag, size = 0x4, scoped, tag = 'scoped memory for svae_forward.5']
    #allocation5 [shape = 'u8[8192]{0}', space=vmem, size = 0x2000, scoped, tag = 'output window, operand 2, single buffered']
    #allocation6 [shape = 's32[1]{0}', space=sflag, size = 0x4, scoped, tag = 'scoped memory for svae_forward.5']
    %18 = vsyncpa [#allocation4], 0
    %19 = vsyncpa [#allocation6], 0
    // Predicated region
    $region2: #{svae_forward.5} parent=1 // pred_check
      _
    $region3: #{svae_forward.5} parent=1 // pred_check_branch
      %21 = sbr.rel (0) target = $region5
    $region4: #{svae_forward.5} parent=1 // pred_region
      _
    $region5: #{svae_forward.5} parent=1 // pred_fallthru
      _
    // Predicated region
    $region6: #{svae_forward.5} parent=1 // pred_check
      _
    $region7: #{svae_forward.5} parent=1 // pred_check_branch
      %23 = sbr.rel (0) target = $region9
    $region8: #{svae_forward.5} parent=1 // pred_region
      _
    $region9: #{svae_forward.5} parent=1 // pred_fallthru
      _
    // Predicated region
    $region10: #{svae_forward.5} parent=1 // pred_check
      _
    $region11: #{svae_forward.5} parent=1 // pred_check_branch
      %25 = sbr.rel (0) target = $region13
    $region12: #{svae_forward.5} parent=1 // pred_region
      _
    $region13: #{svae_forward.5} parent=1 // pred_fallthru
      _
    // Predicated region
    $region14: #{svae_forward.5} parent=1 // pred_check
      _
    $region15: #{svae_forward.5} parent=1 // pred_check_branch
      %27 = sbr.rel (0) target = $region17
    $region16: #{svae_forward.5} parent=1 // pred_region
      _
    $region17: #{svae_forward.5} parent=1 // pred_fallthru
      _
    // Predicated region
    $region18: #{svae_forward.5} parent=1 // pred_check
      _
    $region19: #{svae_forward.5} parent=1 // pred_check_branch
      %29 = sbr.rel (0) target = $region21
    $region20: #{svae_forward.5} parent=1 // pred_region
      _
    $region21: #{svae_forward.5} parent=1 // pred_fallthru
      _
    // Predicated region
    $region22: #{svae_forward.5} parent=1 // pred_check
      _
    $region23: #{svae_forward.5} parent=1 // pred_check_branch
      %31 = sbr.rel (0) target = $region25
    $region24: #{svae_forward.5} parent=1 // pred_region
      _
    $region25: #{svae_forward.5} parent=1 // pred_fallthru
      _
    // Predicated region
    $region26: #{svae_forward.5} parent=1 // pred_check
      _
    $region27: #{svae_forward.5} parent=1 // pred_check_branch
      %33 = sbr.rel (0) target = $region29
    $region28: #{svae_forward.5} parent=1 // pred_region
      _
    $region29: #{svae_forward.5} parent=1 // pred_fallthru
      _
    // Predicated region
    $region30: #{svae_forward.5} parent=1 // pred_check
      _
    $region31: #{svae_forward.5} parent=1 // pred_check_branch
      %35 = sbr.rel (0) target = $region33
    $region32: #{svae_forward.5} parent=1 // pred_region
      _
    $region33: #{svae_forward.5} parent=1 // pred_fallthru
      _
    // Predicated region
    $region34: #{svae_forward.5} parent=1 // pred_check
      _
    $region35: #{svae_forward.5} parent=1 // pred_check_branch
      %37 = sbr.rel (0) target = $region37
    $region36: #{svae_forward.5} parent=1 // pred_region
      _
    $region37: #{svae_forward.5} parent=1 // pred_fallthru
      _
    // Predicated region
    $region38: #{svae_forward.5} parent=1 // pred_check
      _
    $region39: #{svae_forward.5} parent=1 // pred_check_branch
      %39 = sbr.rel (0) target = $region41
    $region40: #{svae_forward.5} parent=1 // pred_region
      _
    $region41: #{svae_forward.5} parent=1 // pred_fallthru
      _
    %p41 = scmp.eq.s32.totalorder 0, 0
    // Predicated region
    $region42: #{svae_forward.5} parent=1 // pred_check
      %p42 = pneg %p41
    $region43: #{svae_forward.5} parent=1 // pred_check_branch
      %44 = sbr.rel (%p42) target = $region45
    $region44: #{svae_forward.5} parent=1 // pred_region
      %v45 = vld [vmem:[%s0] sm:$0xf]
      %v46 = vld [vmem:[%s0 + $0x4] sm:$0xf]
      %v47 = vld [vmem:[%s1] sm:$0xf]
      %v48 = vld [vmem:[%s1 + $0x4] sm:$0xf]
      %v49 = vld [vmem:[%s1 + $0x8] sm:$0xf]
      %v50 = vld [vmem:[%s1 + $0xc] sm:$0xf]
      %v51 = vld [vmem:[%s2] sm:$0x1]
      %v53 = vlaneseq
      %v54 = vshrl.u32 %v53, 7
      %v55 = vsub.s32 0, %v54
      %v56 = vrot.slane %v51, %v55
      %v60 = vunpack.c.l.b16 %v45
      %v61 = vunpack.c.l.b16 %v46
      %v62 = vpack.c.b16 %v61, %v60
      %v67 = vunpack.c.l.b16 %v47
      %v68 = vunpack.c.l.b16 %v48
      %v69 = vunpack.c.l.b16 %v49
      %v70 = vunpack.c.l.b16 %v50
      %v71 = vpack.c.b16 %v68, %v67
      %v72 = vpack.c.b16 %v70, %v69
      %vm75 = vcmask 261120
      %v77 = vsel %vm75, %v62, 0
      %79 = vmatprep.subr.bf16.mxu0 0
      %80 = vmatpush1.bf16.msra.mxu0 %v71
      %81 = vmatprep.subr.bf16.mxu0 0
      %82 = vmatpush1.bf16.msra.mxu0 %v72
      %83 = vmatprep.subr.bf16.mxu0 0
      %84 = vmatpush1.bf16.msra.mxu0 0
      %85 = vmatprep.subr.bf16.mxu0 0
      %86 = vmatpush1.bf16.msra.mxu0 0
      %87 = vmatprep.subr.bf16.mxu0 0
      %88 = vmatpush1.bf16.msra.mxu0 0
      %89 = vmatprep.subr.bf16.mxu0 0
      %90 = vmatpush1.bf16.msra.mxu0 0
      %91 = vmatprep.subr.bf16.mxu0 0
      %92 = vmatpush1.bf16.msra.mxu0 0
      %93 = vmatprep.subr.bf16.mxu0 0
      %94 = vmatpush1.bf16.msra.mxu0 0
      %95 = vmatprep.subr.bf16.mxu0 0
      %96 = vmatpush1.bf16.msra.mxu0 0
      %97 = vmatprep.subr.bf16.mxu0 0
      %98 = vmatpush1.bf16.msra.mxu0 0
      %99 = vmatprep.subr.bf16.mxu0 0
      %100 = vmatpush1.bf16.msra.mxu0 0
      %101 = vmatprep.subr.bf16.mxu0 0
      %102 = vmatpush1.bf16.msra.mxu0 0
      %103 = vmatprep.subr.bf16.mxu0 0
      %104 = vmatpush1.bf16.msra.mxu0 0
      %105 = vmatprep.subr.bf16.mxu0 0
      %106 = vmatpush1.bf16.msra.mxu0 0
      %107 = vmatprep.subr.bf16.mxu0 0
      %108 = vmatpush1.bf16.msra.mxu0 0
      %109 = vmatprep.subr.bf16.mxu0 0
      %110 = vmatpush1.bf16.msra.mxu0 0
      %111 = vmatprep.mubr.bf16.mxu0 0
      %112 = vmatmul.mubr.bf16.gmra.mrb[0].mxu0 %v77
      %v113 = vpop.f32.mrb[0].mxu0
      %v114 = vadd.f32 %v56, %v113
      %v115 = vpop.f32.mrb[0].mxu0
      %v116 = vpop.f32.mrb[0].mxu0
      %v117 = vadd.f32 %v56, %v116
      %v118 = vpop.f32.mrb[0].mxu0
      %119 = vdwg.mxu0
      %v120 = vtanh.pop %v114
      %v121 = vtanh.pop %v117
      %v122 = vpack.c.bf16 %v121, %v120
      %v123 = vld [vmem:[%s3] sm:$0xf]
      %v124 = vld [vmem:[%s3 + $0x4] sm:$0xf]
      %v125 = vld [vmem:[%s3 + $0x8] sm:$0xf]
      %v126 = vld [vmem:[%s3 + $0xc] sm:$0xf]
      %v127 = vld [vmem:[%s4] sm:$0x1]
      %v129 = vlaneseq
      %v130 = vshrl.u32 %v129, 7
      %v131 = vsub.s32 0, %v130
      %v132 = vrot.slane %v127, %v131
      %v138 = vunpack.c.l.b16 %v123
      %v139 = vunpack.c.l.b16 %v124
      %v140 = vunpack.c.l.b16 %v125
      %v141 = vunpack.c.l.b16 %v126
      %v142 = vpack.c.b16 %v139, %v138
      %v143 = vpack.c.b16 %v141, %v140
      %v147 = vsel %vm75, %v122, 0
      %149 = vmatprep.subr.bf16.mxu0 0
      %150 = vmatpush1.bf16.msra.mxu0 %v142
      %151 = vmatprep.subr.bf16.mxu0 0
      %152 = vmatpush1.bf16.msra.mxu0 %v143
      %153 = vmatprep.subr.bf16.mxu0 0
      %154 = vmatpush1.bf16.msra.mxu0 0
      %155 = vmatprep.subr.bf16.mxu0 0
      %156 = vmatpush1.bf16.msra.mxu0 0
      %157 = vmatprep.subr.bf16.mxu0 0
      %158 = vmatpush1.bf16.msra.mxu0 0
      %159 = vmatprep.subr.bf16.mxu0 0
      %160 = vmatpush1.bf16.msra.mxu0 0
      %161 = vmatprep.subr.bf16.mxu0 0
      %162 = vmatpush1.bf16.msra.mxu0 0
      %163 = vmatprep.subr.bf16.mxu0 0
      %164 = vmatpush1.bf16.msra.mxu0 0
      %165 = vmatprep.subr.bf16.mxu0 0
      %166 = vmatpush1.bf16.msra.mxu0 0
      %167 = vmatprep.subr.bf16.mxu0 0
      %168 = vmatpush1.bf16.msra.mxu0 0
      %169 = vmatprep.subr.bf16.mxu0 0
      %170 = vmatpush1.bf16.msra.mxu0 0
      %171 = vmatprep.subr.bf16.mxu0 0
      %172 = vmatpush1.bf16.msra.mxu0 0
      %173 = vmatprep.subr.bf16.mxu0 0
      %174 = vmatpush1.bf16.msra.mxu0 0
      %175 = vmatprep.subr.bf16.mxu0 0
      %176 = vmatpush1.bf16.msra.mxu0 0
      %177 = vmatprep.subr.bf16.mxu0 0
      %178 = vmatpush1.bf16.msra.mxu0 0
      %179 = vmatprep.subr.bf16.mxu0 0
      %180 = vmatpush1.bf16.msra.mxu0 0
      %181 = vmatprep.mubr.bf16.mxu0 0
      %182 = vmatmul.mubr.bf16.gmra.mrb[0].mxu0 %v147
      %v183 = vpop.f32.mrb[0].mxu0
      %v184 = vadd.f32 %v132, %v183
      %v185 = vpop.f32.mrb[0].mxu0
      %v186 = vpop.f32.mrb[0].mxu0
      %v187 = vadd.f32 %v132, %v186
      %v188 = vpop.f32.mrb[0].mxu0
      %189 = vdwg.mxu0
      %v190 = vmul.f32 %v184, 1.442695
      %v191 = vpow.pop %v190
      %v192 = vmul.f32 %v187, 1.442695
      %v193 = vpow.pop %v192
      %v194 = vld [vmem:[%s5] sm:$0xff]
      %v195 = vld [vmem:[%s5 + $0x8] sm:$0xff]
      %198 = vrot.lane.b32.xlu0 %v194, 16
      %v199 = vpop.permute.xlu0 %198
      %200 = vrot.lane.b32.xlu0 %v195, 16
      %v201 = vpop.permute.xlu0 %200
      %v204 = vmul.f32 %v191, %v199
      %v205 = vmul.f32 %v193, %v201
      %208 = vrot.lane.b32.xlu0 %v204, 112
      %v209 = vpop.permute.xlu0 %208
      %210 = vrot.lane.b32.xlu0 %v205, 112
      %v211 = vpop.permute.xlu0 %210
      %v214 = vadd.f32 %v184, %v209
      %v215 = vadd.f32 %v187, %v211
      %v216 = vpack.c.bf16 %v215, %v214
      %v217 = vld [vmem:[%s6] sm:$0xf]
      %v218 = vld [vmem:[%s6 + $0x4] sm:$0xf]
      %v219 = vld [vmem:[%s7] sm:$0x1]
      %v221 = vlaneseq
      %v222 = vshrl.u32 %v221, 7
      %v223 = vsub.s32 0, %v222
      %v224 = vrot.slane %v219, %v223
      %v228 = vunpack.c.l.b16 %v217
      %v229 = vunpack.c.l.b16 %v218
      %v230 = vpack.c.b16 %v229, %v228
      %vm232 = vcmask 130048
      %v234 = vsel %vm232, %v216, 0
      %236 = vmatprep.subr.bf16.mxu0 0
      %237 = vmatpush1.bf16.msra.mxu0 %v230
      %238 = vmatprep.subr.bf16.mxu0 0
      %239 = vmatpush1.bf16.msra.mxu0 0
      %240 = vmatprep.subr.bf16.mxu0 0
      %241 = vmatpush1.bf16.msra.mxu0 0
      %242 = vmatprep.subr.bf16.mxu0 0
      %243 = vmatpush1.bf16.msra.mxu0 0
      %244 = vmatprep.subr.bf16.mxu0 0
      %245 = vmatpush1.bf16.msra.mxu0 0
      %246 = vmatprep.subr.bf16.mxu0 0
      %247 = vmatpush1.bf16.msra.mxu0 0
      %248 = vmatprep.subr.bf16.mxu0 0
      %249 = vmatpush1.bf16.msra.mxu0 0
      %250 = vmatprep.subr.bf16.mxu0 0
      %251 = vmatpush1.bf16.msra.mxu0 0
      %252 = vmatprep.subr.bf16.mxu0 0
      %253 = vmatpush1.bf16.msra.mxu0 0
      %254 = vmatprep.subr.bf16.mxu0 0
      %255 = vmatpush1.bf16.msra.mxu0 0
      %256 = vmatprep.subr.bf16.mxu0 0
      %257 = vmatpush1.bf16.msra.mxu0 0
      %258 = vmatprep.subr.bf16.mxu0 0
      %259 = vmatpush1.bf16.msra.mxu0 0
      %260 = vmatprep.subr.bf16.mxu0 0
      %261 = vmatpush1.bf16.msra.mxu0 0
      %262 = vmatprep.subr.bf16.mxu0 0
      %263 = vmatpush1.bf16.msra.mxu0 0
      %264 = vmatprep.subr.bf16.mxu0 0
      %265 = vmatpush1.bf16.msra.mxu0 0
      %266 = vmatprep.subr.bf16.mxu0 0
      %267 = vmatpush1.bf16.msra.mxu0 0
      %268 = vmatprep.mubr.bf16.mxu0 0
      %269 = vmatmul.mubr.bf16.gmra.mrb[0].mxu0 %v234
      %v270 = vpop.f32.mrb[0].mxu0
      %v271 = vadd.f32 %v224, %v270
      %v272 = vpop.f32.mrb[0].mxu0
      %v273 = vpop.f32.mrb[0].mxu0
      %v274 = vadd.f32 %v224, %v273
      %v275 = vpop.f32.mrb[0].mxu0
      %276 = vdwg.mxu0
      %v277 = vtanh.pop %v271
      %v278 = vtanh.pop %v274
      %v279 = vpack.c.bf16 %v278, %v277
      %280 = vst.msk [vmem:[#allocation2] sm:$0xff] %vm75, %v279
      %281 = vst.msk [vmem:[#allocation3] sm:$0xff] %vm232, %v184
      %282 = vst.msk [vmem:[#allocation3 + $0x8] sm:$0xff] %vm232, %v187
      %285 = vrot.lane.b32.xlu0 %v184, 112
      %v286 = vpop.permute.xlu0 %285
      %287 = vrot.lane.b32.xlu0 %v187, 112
      %v288 = vpop.permute.xlu0 %287
      %291 = vst.msk [vmem:[#allocation5] sm:$0xff] %vm232, %v286
      %292 = vst.msk [vmem:[#allocation5 + $0x8] sm:$0xff] %vm232, %v288
    $region45: #{svae_forward.5} parent=1 // pred_fallthru
      _
    %v293 = vld [vmem:[#allocation2] sm:$0xff]
    %v294 = vld [vmem:[%s8] sm:$0xf]
    %v295 = vld [vmem:[%s8 + $0x4] sm:$0xf]
    %v296 = vld [vmem:[%s8 + $0x8] sm:$0xf]
    %v297 = vld [vmem:[%s8 + $0xc] sm:$0xf]
    %v298 = vld [vmem:[%s9] sm:$0x1]
    %v300 = vlaneseq
    %v301 = vshrl.u32 %v300, 7
    %v302 = vsub.s32 0, %v301
    %v303 = vrot.slane %v298, %v302
    %v309 = vunpack.c.l.b16 %v294
    %v310 = vunpack.c.l.b16 %v295
    %v311 = vunpack.c.l.b16 %v296
    %v312 = vunpack.c.l.b16 %v297
    %v313 = vpack.c.b16 %v310, %v309
    %v314 = vpack.c.b16 %v312, %v311
    %vm317 = vcmask 261120
    %v319 = vsel %vm317, %v293, 0
    %321 = vmatprep.subr.bf16.mxu0 0
    %322 = vmatpush1.bf16.msra.mxu0 %v313
    %323 = vmatprep.subr.bf16.mxu0 0
    %324 = vmatpush1.bf16.msra.mxu0 %v314
    %325 = vmatprep.subr.bf16.mxu0 0
    %326 = vmatpush1.bf16.msra.mxu0 0
    %327 = vmatprep.subr.bf16.mxu0 0
    %328 = vmatpush1.bf16.msra.mxu0 0
    %329 = vmatprep.subr.bf16.mxu0 0
    %330 = vmatpush1.bf16.msra.mxu0 0
    %331 = vmatprep.subr.bf16.mxu0 0
    %332 = vmatpush1.bf16.msra.mxu0 0
    %333 = vmatprep.subr.bf16.mxu0 0
    %334 = vmatpush1.bf16.msra.mxu0 0
    %335 = vmatprep.subr.bf16.mxu0 0
    %336 = vmatpush1.bf16.msra.mxu0 0
    %337 = vmatprep.subr.bf16.mxu0 0
    %338 = vmatpush1.bf16.msra.mxu0 0
    %339 = vmatprep.subr.bf16.mxu0 0
    %340 = vmatpush1.bf16.msra.mxu0 0
    %341 = vmatprep.subr.bf16.mxu0 0
    %342 = vmatpush1.bf16.msra.mxu0 0
    %343 = vmatprep.subr.bf16.mxu0 0
    %344 = vmatpush1.bf16.msra.mxu0 0
    %345 = vmatprep.subr.bf16.mxu0 0
    %346 = vmatpush1.bf16.msra.mxu0 0
    %347 = vmatprep.subr.bf16.mxu0 0
    %348 = vmatpush1.bf16.msra.mxu0 0
    %349 = vmatprep.subr.bf16.mxu0 0
    %350 = vmatpush1.bf16.msra.mxu0 0
    %351 = vmatprep.subr.bf16.mxu0 0
    %352 = vmatpush1.bf16.msra.mxu0 0
    %353 = vmatprep.mubr.bf16.mxu0 0
    %354 = vmatmul.mubr.bf16.gmra.mrb[0].mxu0 %v319
    %v355 = vpop.f32.mrb[0].mxu0
    %v356 = vadd.f32 %v303, %v355
    %v357 = vpop.f32.mrb[0].mxu0
    %v358 = vpop.f32.mrb[0].mxu0
    %v359 = vadd.f32 %v303, %v358
    %v360 = vpop.f32.mrb[0].mxu0
    %361 = vdwg.mxu0
    %362 = vst [vmem:[%s10] sm:$0xff] %v356
    %363 = vst [vmem:[%s10 + $0x8] sm:$0xff] %v359
    // Predicated region
    $region46: #{svae_forward.5} parent=1 // pred_check
      _
    $region47: #{svae_forward.5} parent=1 // pred_check_branch
      %365 = sbr.rel (0) target = $region49
    $region48: #{svae_forward.5} parent=1 // pred_region
      _
    $region49: #{svae_forward.5} parent=1 // pred_fallthru
      _
    // Predicated region
    $region50: #{svae_forward.5} parent=1 // pred_check
      _
    $region51: #{svae_forward.5} parent=1 // pred_check_branch
      %367 = sbr.rel (0) target = $region53
    $region52: #{svae_forward.5} parent=1 // pred_region
      %s369 = ssub.s32 256, 256
      %370 = vsyncadd [#allocation4], %s369
      %s371 = sshll.u32 [#allocation3], 4
      %s372 = int_to_ptr.vmem [resolvable:$true] %s371
      %377 = dma.vmem_to_hbm [thread:$0]  %s372, 256, %s11, [#allocation4], 128, 128, 8
    $region53: #{svae_forward.5} parent=1 // pred_fallthru
      _
    // Predicated region
    $region54: #{svae_forward.5} parent=1 // pred_check
      _
    $region55: #{svae_forward.5} parent=1 // pred_check_branch
      %379 = sbr.rel (0) target = $region57
    $region56: #{svae_forward.5} parent=1 // pred_region
      %s381 = ssub.s32 256, 256
      %382 = vsyncadd [#allocation6], %s381
      %s383 = sshll.u32 [#allocation5], 4
      %s384 = int_to_ptr.vmem [resolvable:$true] %s383
      %389 = dma.vmem_to_hbm [thread:$0]  %s384, 256, %s12, [#allocation6], 128, 128, 8
    $region57: #{svae_forward.5} parent=1 // pred_fallthru
      _
    // Predicated region
    $region58: #{svae_forward.5} parent=1 // pred_check
      _
    $region59: #{svae_forward.5} parent=1 // pred_check_branch
      %391 = sbr.rel (0) target = $region61
    $region60: #{svae_forward.5} parent=1 // pred_region
      _
    $region61: #{svae_forward.5} parent=1 // pred_fallthru
      _
    // Predicated region
    $region62: #{svae_forward.5} parent=1 // pred_check
      _
    $region63: #{svae_forward.5} parent=1 // pred_check_branch
      %393 = sbr.rel (0) target = $region65
    $region64: #{svae_forward.5} parent=1 // pred_region
      %394 = dma.done [#allocation4], 256
    $region65: #{svae_forward.5} parent=1 // pred_fallthru
      _
    // Predicated region
    $region66: #{svae_forward.5} parent=1 // pred_check
      _
    $region67: #{svae_forward.5} parent=1 // pred_check_branch
      %396 = sbr.rel (0) target = $region69
    $region68: #{svae_forward.5} parent=1 // pred_region
      %397 = dma.done [#allocation6], 256
    $region69: #{svae_forward.5} parent=1 // pred_fallthru
      _
    %398 = vsyncpa [#allocation4], 1
    %399 = vsyncpa [#allocation6], 1

// kernel: svae_forward.4
$region0: #{svae_forward.4}
  #allocation0 [shape = 'u32[]', space=smem, size = 0x4, offset = 0x4, fixed_abs, tag = 'smem constant byte address 0x4 - core index']
  #allocation1 [shape = 'u32[144,128]{1,0:T(1,128)}', space=vmem, size = 0x12000, scoped, tag = 'internal scratch']
  #allocation2 [shape = 'f32[2,32]{1,0:T(2,128)}', space=vmem, size = 0x400, scoped, tag = 'scratch operand']
  %s0 = inlined_call_operand.vmem [shape: bf16[8,2,96], index: 0, kind: input, shape index: {}]
  %s1 = inlined_call_operand.vmem [shape: bf16[32,96], index: 1, kind: input, shape index: {}]
  %s2 = inlined_call_operand.vmem [shape: f32[1,32], index: 2, kind: input, shape index: {}]
  %s3 = inlined_call_operand.vmem [shape: bf16[2,8,32], index: 3, kind: output, shape index: {}]
  %s4 = sld [smem:[#allocation0]]
  $region26: #{svae_forward.4} parent=0
    _
  %s6 = ssub.s32 1, %s4
  %s7 = scalar_select 0, %s6, %s4
  // Predicated region
  $region2: #{svae_forward.4} parent=0 // pred_check
    _
  $region3: #{svae_forward.4} parent=0 // pred_check_branch
    %9 = sbr.rel (0) target = $region5
  $region4: #{svae_forward.4} parent=0 // pred_region
    _
  $region5: #{svae_forward.4} parent=0 // pred_fallthru
    _
  // Predicated region
  $region6: #{svae_forward.4} parent=0 // pred_check
    _
  $region7: #{svae_forward.4} parent=0 // pred_check_branch
    %11 = sbr.rel (0) target = $region9
  $region8: #{svae_forward.4} parent=0 // pred_region
    _
  $region9: #{svae_forward.4} parent=0 // pred_fallthru
    _
  // Predicated region
  $region10: #{svae_forward.4} parent=0 // pred_check
    _
  $region11: #{svae_forward.4} parent=0 // pred_check_branch
    %13 = sbr.rel (0) target = $region13
  $region12: #{svae_forward.4} parent=0 // pred_region
    _
  $region13: #{svae_forward.4} parent=0 // pred_fallthru
    _
  %p15 = scmp.eq.s32.totalorder 0, 0
  // Predicated region
  $region14: #{svae_forward.4} parent=0 // pred_check
    %p16 = pneg %p15
  $region15: #{svae_forward.4} parent=0 // pred_check_branch
    %18 = sbr.rel (%p16) target = $region17
  $region16: #{svae_forward.4} parent=0 // pred_region
    %vm19 = vcmask 254976
    %20 = vst.msk [vmem:[#allocation2] sm:$0x3] %vm19, 0.0
  $region17: #{svae_forward.4} parent=0 // pred_fallthru
    _
  %v21 = vld [vmem:[%s1] sm:$0xf]
  %v22 = vld [vmem:[%s1 + $0x4] sm:$0xf]
  %v23 = vld [vmem:[%s1 + $0x8] sm:$0xf]
  %v24 = vld [vmem:[%s1 + $0xc] sm:$0xf]
  %v25 = vld [vmem:[%s2] sm:$0x1]
  %v27 = vlaneseq
  %v28 = vshrl.u32 %v27, 7
  %v29 = vsub.s32 0, %v28
  %v30 = vrot.slane %v25, %v29
  %v31 = vld [vmem:[#allocation2] sm:$0x3]
  %v32 = vpack.c.bf16 %v31, %v31
  %v37 = vunpack.c.l.b16 %v21
  %v38 = vunpack.c.l.b16 %v22
  %v39 = vunpack.c.l.b16 %v23
  %v40 = vunpack.c.l.b16 %v24
  %v41 = vpack.c.b16 %v38, %v37
  %v42 = vpack.c.b16 %v40, %v39
  %vm45 = vcmask 261120
  %v47 = vsel %vm45, %v32, 0
  %49 = vmatprep.subr.bf16.mxu0 0
  %50 = vmatpush1.bf16.msra.mxu0 %v41
  %51 = vmatprep.subr.bf16.mxu0 0
  %52 = vmatpush1.bf16.msra.mxu0 %v42
  %53 = vmatprep.subr.bf16.mxu0 0
  %54 = vmatpush1.bf16.msra.mxu0 0
  %55 = vmatprep.subr.bf16.mxu0 0
  %56 = vmatpush1.bf16.msra.mxu0 0
  %57 = vmatprep.subr.bf16.mxu0 0
  %58 = vmatpush1.bf16.msra.mxu0 0
  %59 = vmatprep.subr.bf16.mxu0 0
  %60 = vmatpush1.bf16.msra.mxu0 0
  %61 = vmatprep.subr.bf16.mxu0 0
  %62 = vmatpush1.bf16.msra.mxu0 0
  %63 = vmatprep.subr.bf16.mxu0 0
  %64 = vmatpush1.bf16.msra.mxu0 0
  %65 = vmatprep.subr.bf16.mxu0 0
  %66 = vmatpush1.bf16.msra.mxu0 0
  %67 = vmatprep.subr.bf16.mxu0 0
  %68 = vmatpush1.bf16.msra.mxu0 0
  %69 = vmatprep.subr.bf16.mxu0 0
  %70 = vmatpush1.bf16.msra.mxu0 0
  %71 = vmatprep.subr.bf16.mxu0 0
  %72 = vmatpush1.bf16.msra.mxu0 0
  %73 = vmatprep.subr.bf16.mxu0 0
  %74 = vmatpush1.bf16.msra.mxu0 0
  %75 = vmatprep.subr.bf16.mxu0 0
  %76 = vmatpush1.bf16.msra.mxu0 0
  %77 = vmatprep.subr.bf16.mxu0 0
  %78 = vmatpush1.bf16.msra.mxu0 0
  %79 = vmatprep.subr.bf16.mxu0 0
  %80 = vmatpush1.bf16.msra.mxu0 0
  %81 = vmatprep.mubr.bf16.mxu0 0
  %82 = vmatmul.mubr.bf16.gmra.mrb[0].mxu0 %v47
  %v83 = vpop.f32.mrb[0].mxu0
  %v84 = vadd.f32 0.0, %v83
  %v85 = vpop.f32.mrb[0].mxu0
  %v86 = vpop.f32.mrb[0].mxu0
  %v87 = vpop.f32.mrb[0].mxu0
  %88 = vdwg.mxu0
  %v89 = vld [vmem:[%s0] sm:$0x1]
  %v90 = vunpack.c.l.bf16 %v89
  %v91 = vadd.f32 %v90, %v84
  %v92 = vxor.u32 %v91, 2147483648
  %v93 = vmul.f32 %v92, 1.442695
  %v94 = vpow.pop %v93
  %v95 = vadd.f32 %v94, 1.0
  %v96 = vrcp.pop %v95
  %v97 = vmul.f32 1.0, %v96
  %98 = vrot.lane.b32.xlu0 %v30, 64
  %v99 = vpop.permute.xlu0 %98
  %v101 = vadd.f32 %v84, %v99
  %v104 = vunpack.c.l.s4 1983009808
  %v105 = vunpack.c.0.s8 %v104
  %v106 = vlaneseq
  %v107 = vshrl.u32 %v106, 7
  %v108 = vsub.s32 %v105, %v107
  %v109 = vrot.slane %v101, %v108
  %110 = vrot.lane.b32.xlu0 %v109, 64
  %v111 = vpop.permute.xlu0 %110
  %v113 = vmul.f32 %v97, %v111
  %115 = vrot.lane.b32.xlu0 %v113, 64
  %v116 = vpop.permute.xlu0 %115
  %v118 = vadd.f32 %v90, %v116
  %v119 = vtanh.pop %v118
  %v120 = vsub.f32 1.0, %v97
  %122 = vrot.lane.b32.xlu0 %v119, 96
  %v123 = vpop.permute.xlu0 %122
  %v125 = vmul.f32 %v120, %v123
  %v128 = vunpack.c.l.s4 1983009808
  %v129 = vunpack.c.0.s8 %v128
  %v130 = vlaneseq
  %v131 = vshrl.u32 %v130, 7
  %v132 = vsub.s32 %v129, %v131
  %v133 = vrot.slane %v31, %v132
  %134 = vrot.lane.b32.xlu0 %v133, 32
  %v135 = vpop.permute.xlu0 %134
  %v137 = vmul.f32 %v97, %v135
  %v138 = vadd.f32 %v125, %v137
  %v139 = vpack.c.bf16 %v138, %v138
  %v142 = vunpack.c.l.s4 1966171168
  %v143 = vunpack.c.0.s8 %v142
  %v144 = vlaneseq
  %v145 = vshrl.u32 %v144, 7
  %v146 = vsub.s32 %v143, %v145
  %v147 = vrot.slane %v139, %v146
  %v149 = vunpack.c.l.s4 1966171168
  %v150 = vunpack.c.0.s8 %v149
  %v151 = vlaneseq
  %v152 = vshrl.u32 %v151, 7
  %v153 = vsub.s32 %v150, %v152
  %v154 = vrot.slane %v147, %v153
  %v155 = vunpack.i.l.s16 %v154
  %v156 = vunpack.i.h.s16 %v154
  %v157 = vpack.i.b16 %v155, %v155
  %v158 = vpack.i.b16 %v156, %v156
  %v160 = vunpack.c.l.s4 286326784
  %v161 = vunpack.c.0.s8 %v160
  %v162 = vlaneseq
  %v163 = vshrl.u32 %v162, 7
  %v164 = vsub.s32 %v161, %v163
  %v165 = vrot.slane %v157, %v164
  %v167 = vunpack.c.l.s4 286326784
  %v168 = vunpack.c.0.s8 %v167
  %v169 = vlaneseq
  %v170 = vshrl.u32 %v169, 7
  %v171 = vsub.s32 %v168, %v170
  %v172 = vrot.slane %v158, %v171
  %173 = vrot.lane.b32.xlu0 %v165, 96
  %v174 = vpop.permute.xlu0 %173
  %175 = vrot.lane.b32.xlu0 %v172, 96
  %v176 = vpop.permute.xlu0 %175
  %vm179 = vcmask 253952
  %vm180 = vsmask.f32 256
  %vm181 = vmand %vm179, %vm180
  %v182 = vld [vmem:[%s3] sm:$0x1]
  %v183 = vsel %vm181, %v174, %v182
  %184 = vst [vmem:[%s3] sm:$0x1] %v183
  %v185 = vld [vmem:[%s3 + $0x4] sm:$0x1]
  %v186 = vsel %vm181, %v176, %v185
  %187 = vst [vmem:[%s3 + $0x4] sm:$0x1] %v186
  %188 = vrot.lane.b32.xlu0 %v139, 96
  %v189 = vpop.permute.xlu0 %188
  %v191 = vsel %vm45, %v189, 0
  %193 = vmatprep.subr.bf16.mxu0 0
  %194 = vmatpush1.bf16.msra.mxu0 %v41
  %195 = vmatprep.subr.bf16.mxu0 0
  %196 = vmatpush1.bf16.msra.mxu0 %v42
  %197 = vmatprep.subr.bf16.mxu0 0
  %198 = vmatpush1.bf16.msra.mxu0 0
  %199 = vmatprep.subr.bf16.mxu0 0
  %200 = vmatpush1.bf16.msra.mxu0 0
  %201 = vmatprep.subr.bf16.mxu0 0
  %202 = vmatpush1.bf16.msra.mxu0 0
  %203 = vmatprep.subr.bf16.mxu0 0
  %204 = vmatpush1.bf16.msra.mxu0 0
  %205 = vmatprep.subr.bf16.mxu0 0
  %206 = vmatpush1.bf16.msra.mxu0 0
  %207 = vmatprep.subr.bf16.mxu0 0
  %208 = vmatpush1.bf16.msra.mxu0 0
  %209 = vmatprep.subr.bf16.mxu0 0
  %210 = vmatpush1.bf16.msra.mxu0 0
  %211 = vmatprep.subr.bf16.mxu0 0
  %212 = vmatpush1.bf16.msra.mxu0 0
  %213 = vmatprep.subr.bf16.mxu0 0
  %214 = vmatpush1.bf16.msra.mxu0 0
  %215 = vmatprep.subr.bf16.mxu0 0
  %216 = vmatpush1.bf16.msra.mxu0 0
  %217 = vmatprep.subr.bf16.mxu0 0
  %218 = vmatpush1.bf16.msra.mxu0 0
  %219 = vmatprep.subr.bf16.mxu0 0
  %220 = vmatpush1.bf16.msra.mxu0 0
  %221 = vmatprep.subr.bf16.mxu0 0
  %222 = vmatpush1.bf16.msra.mxu0 0
  %223 = vmatprep.subr.bf16.mxu0 0
  %224 = vmatpush1.bf16.msra.mxu0 0
  %225 = vmatprep.mubr.bf16.mxu0 0
  %226 = vmatmul.mubr.bf16.gmra.mrb[0].mxu0 %v191
  %v227 = vpop.f32.mrb[0].mxu0
  %v228 = vadd.f32 0.0, %v227
  %v229 = vpop.f32.mrb[0].mxu0
  %v230 = vpop.f32.mrb[0].mxu0
  %v231 = vpop.f32.mrb[0].mxu0
  %232 = vdwg.mxu0
  %s233 = scalar_lea.vmem %s0, 1
  %v234 = vld [vmem:[%s233] sm:$0x1]
  %v235 = vunpack.c.l.bf16 %v234
  %v236 = vadd.f32 %v235, %v228
  %v237 = vxor.u32 %v236, 2147483648
  %v238 = vmul.f32 %v237, 1.442695
  %v239 = vpow.pop %v238
  %v240 = vadd.f32 %v239, 1.0
  %v241 = vrcp.pop %v240
  %v242 = vmul.f32 1.0, %v241
  %v243 = vadd.f32 %v228, %v99
  %v246 = vunpack.c.l.s4 1983009808
  %v247 = vunpack.c.0.s8 %v246
  %v248 = vlaneseq
  %v249 = vshrl.u32 %v248, 7
  %v250 = vsub.s32 %v247, %v249
  %v251 = vrot.slane %v243, %v250
  %252 = vrot.lane.b32.xlu0 %v251, 64
  %v253 = vpop.permute.xlu0 %252
  %v255 = vmul.f32 %v242, %v253
  %257 = vrot.lane.b32.xlu0 %v255, 64
  %v258 = vpop.permute.xlu0 %257
  %v260 = vadd.f32 %v235, %v258
  %v261 = vtanh.pop %v260
  %v262 = vsub.f32 1.0, %v242
  %264 = vrot.lane.b32.xlu0 %v261, 96
  %v265 = vpop.permute.xlu0 %264
  %v267 = vmul.f32 %v262, %v265
  %v268 = vmul.f32 %v242, %v138
  %v269 = vadd.f32 %v267, %v268
  %v270 = vpack.c.bf16 %v269, %v269
  %v273 = vunpack.c.l.s4 1966171168
  %v274 = vunpack.c.0.s8 %v273
  %v275 = vlaneseq
  %v276 = vshrl.u32 %v275, 7
  %v277 = vsub.s32 %v274, %v276
  %v278 = vrot.slane %v270, %v277
  %v280 = vunpack.c.l.s4 1966171168
  %v281 = vunpack.c.0.s8 %v280
  %v282 = vlaneseq
  %v283 = vshrl.u32 %v282, 7
  %v284 = vsub.s32 %v281, %v283
  %v285 = vrot.slane %v278, %v284
  %v286 = vunpack.i.l.s16 %v285
  %v287 = vunpack.i.h.s16 %v285
  %v288 = vpack.i.b16 %v286, %v286
  %v289 = vpack.i.b16 %v287, %v287
  %v291 = vunpack.c.l.s4 286326784
  %v292 = vunpack.c.0.s8 %v291
  %v293 = vlaneseq
  %v294 = vshrl.u32 %v293, 7
  %v295 = vsub.s32 %v292, %v294
  %v296 = vrot.slane %v288, %v295
  %v298 = vunpack.c.l.s4 286326784
  %v299 = vunpack.c.0.s8 %v298
  %v300 = vlaneseq
  %v301 = vshrl.u32 %v300, 7
  %v302 = vsub.s32 %v299, %v301
  %v303 = vrot.slane %v289, %v302
  %304 = vrot.lane.b32.xlu0 %v296, 96
  %v305 = vpop.permute.xlu0 %304
  %306 = vrot.lane.b32.xlu0 %v303, 96
  %v307 = vpop.permute.xlu0 %306
  %vm310 = vsmask.f32 7938
  %vm311 = vmand %vm179, %vm310
  %v312 = vld [vmem:[%s3] sm:$0x1]
  %v313 = vsel %vm311, %v305, %v312
  %314 = vst [vmem:[%s3] sm:$0x1] %v313
  %v315 = vld [vmem:[%s3 + $0x4] sm:$0x1]
  %v316 = vsel %vm311, %v307, %v315
  %317 = vst [vmem:[%s3 + $0x4] sm:$0x1] %v316
  %318 = vrot.lane.b32.xlu0 %v270, 96
  %v319 = vpop.permute.xlu0 %318
  %v321 = vsel %vm45, %v319, 0
  %323 = vmatprep.subr.bf16.mxu0 0
  %324 = vmatpush1.bf16.msra.mxu0 %v41
  %325 = vmatprep.subr.bf16.mxu0 0
  %326 = vmatpush1.bf16.msra.mxu0 %v42
  %327 = vmatprep.subr.bf16.mxu0 0
  %328 = vmatpush1.bf16.msra.mxu0 0
  %329 = vmatprep.subr.bf16.mxu0 0
  %330 = vmatpush1.bf16.msra.mxu0 0
  %331 = vmatprep.subr.bf16.mxu0 0
  %332 = vmatpush1.bf16.msra.mxu0 0
  %333 = vmatprep.subr.bf16.mxu0 0
  %334 = vmatpush1.bf16.msra.mxu0 0
  %335 = vmatprep.subr.bf16.mxu0 0
  %336 = vmatpush1.bf16.msra.mxu0 0
  %337 = vmatprep.subr.bf16.mxu0 0
  %338 = vmatpush1.bf16.msra.mxu0 0
  %339 = vmatprep.subr.bf16.mxu0 0
  %340 = vmatpush1.bf16.msra.mxu0 0
  %341 = vmatprep.subr.bf16.mxu0 0
  %342 = vmatpush1.bf16.msra.mxu0 0
  %343 = vmatprep.subr.bf16.mxu0 0
  %344 = vmatpush1.bf16.msra.mxu0 0
  %345 = vmatprep.subr.bf16.mxu0 0
  %346 = vmatpush1.bf16.msra.mxu0 0
  %347 = vmatprep.subr.bf16.mxu0 0
  %348 = vmatpush1.bf16.msra.mxu0 0
  %349 = vmatprep.subr.bf16.mxu0 0
  %350 = vmatpush1.bf16.msra.mxu0 0
  %351 = vmatprep.subr.bf16.mxu0 0
  %352 = vmatpush1.bf16.msra.mxu0 0
  %353 = vmatprep.subr.bf16.mxu0 0
  %354 = vmatpush1.bf16.msra.mxu0 0
  %355 = vmatprep.mubr.bf16.mxu0 0
  %356 = vmatmul.mubr.bf16.gmra.mrb[0].mxu0 %v321
  %v357 = vpop.f32.mrb[0].mxu0
  %v358 = vadd.f32 0.0, %v357
  %v359 = vpop.f32.mrb[0].mxu0
  %v360 = vpop.f32.mrb[0].mxu0
  %v361 = vpop.f32.mrb[0].mxu0
  %362 = vdwg.mxu0
  %s363 = scalar_lea.vmem %s0, 2
  %v364 = vld [vmem:[%s363] sm:$0x1]
  %v365 = vunpack.c.l.bf16 %v364
  %v366 = vadd.f32 %v365, %v358
  %v367 = vxor.u32 %v366, 2147483648
  %v368 = vmul.f32 %v367, 1.442695
  %v369 = vpow.pop %v368
  %v370 = vadd.f32 %v369, 1.0
  %v371 = vrcp.pop %v370
  %v372 = vmul.f32 1.0, %v371
  %v373 = vadd.f32 %v358, %v99
  %v376 = vunpack.c.l.s4 1983009808
  %v377 = vunpack.c.0.s8 %v376
  %v378 = vlaneseq
  %v379 = vshrl.u32 %v378, 7
  %v380 = vsub.s32 %v377, %v379
  %v381 = vrot.slane %v373, %v380
  %382 = vrot.lane.b32.xlu0 %v381, 64
  %v383 = vpop.permute.xlu0 %382
  %v385 = vmul.f32 %v372, %v383
  %387 = vrot.lane.b32.xlu0 %v385, 64
  %v388 = vpop.permute.xlu0 %387
  %v390 = vadd.f32 %v365, %v388
  %v391 = vtanh.pop %v390
  %v392 = vsub.f32 1.0, %v372
  %394 = vrot.lane.b32.xlu0 %v391, 96
  %v395 = vpop.permute.xlu0 %394
  %v397 = vmul.f32 %v392, %v395
  %v398 = vmul.f32 %v372, %v269
  %v399 = vadd.f32 %v397, %v398
  %v400 = vpack.c.bf16 %v399, %v399
  %v403 = vunpack.c.l.s4 1966171168
  %v404 = vunpack.c.0.s8 %v403
  %v405 = vlaneseq
  %v406 = vshrl.u32 %v405, 7
  %v407 = vsub.s32 %v404, %v406
  %v408 = vrot.slane %v400, %v407
  %v410 = vunpack.c.l.s4 1966171168
  %v411 = vunpack.c.0.s8 %v410
  %v412 = vlaneseq
  %v413 = vshrl.u32 %v412, 7
  %v414 = vsub.s32 %v411, %v413
  %v415 = vrot.slane %v408, %v414
  %v416 = vunpack.i.l.s16 %v415
  %v417 = vunpack.i.h.s16 %v415
  %v418 = vpack.i.b16 %v416, %v416
  %v419 = vpack.i.b16 %v417, %v417
  %v421 = vunpack.c.l.s4 286326784
  %v422 = vunpack.c.0.s8 %v421
  %v423 = vlaneseq
  %v424 = vshrl.u32 %v423, 7
  %v425 = vsub.s32 %v422, %v424
  %v426 = vrot.slane %v418, %v425
  %v428 = vunpack.c.l.s4 286326784
  %v429 = vunpack.c.0.s8 %v428
  %v430 = vlaneseq
  %v431 = vshrl.u32 %v430, 7
  %v432 = vsub.s32 %v429, %v431
  %v433 = vrot.slane %v419, %v432
  %434 = vrot.lane.b32.xlu0 %v426, 96
  %v435 = vpop.permute.xlu0 %434
  %436 = vrot.lane.b32.xlu0 %v433, 96
  %v437 = vpop.permute.xlu0 %436
  %vm440 = vcmask 254977
  %vm441 = vsmask.f32 1280
  %vm442 = vmand %vm440, %vm441
  %v443 = vld [vmem:[%s3] sm:$0x2]
  %v444 = vsel %vm442, %v435, %v443
  %445 = vst [vmem:[%s3] sm:$0x2] %v444
  %v446 = vld [vmem:[%s3 + $0x4] sm:$0x2]
  %v447 = vsel %vm442, %v437, %v446
  %448 = vst [vmem:[%s3 + $0x4] sm:$0x2] %v447
  %449 = vrot.lane.b32.xlu0 %v400, 96
  %v450 = vpop.permute.xlu0 %449
  %v452 = vsel %vm45, %v450, 0
  %454 = vmatprep.subr.bf16.mxu0 0
  %455 = vmatpush1.bf16.msra.mxu0 %v41
  %456 = vmatprep.subr.bf16.mxu0 0
  %457 = vmatpush1.bf16.msra.mxu0 %v42
  %458 = vmatprep.subr.bf16.mxu0 0
  %459 = vmatpush1.bf16.msra.mxu0 0
  %460 = vmatprep.subr.bf16.mxu0 0
  %461 = vmatpush1.bf16.msra.mxu0 0
  %462 = vmatprep.subr.bf16.mxu0 0
  %463 = vmatpush1.bf16.msra.mxu0 0
  %464 = vmatprep.subr.bf16.mxu0 0
  %465 = vmatpush1.bf16.msra.mxu0 0
  %466 = vmatprep.subr.bf16.mxu0 0
  %467 = vmatpush1.bf16.msra.mxu0 0
  %468 = vmatprep.subr.bf16.mxu0 0
  %469 = vmatpush1.bf16.msra.mxu0 0
  %470 = vmatprep.subr.bf16.mxu0 0
  %471 = vmatpush1.bf16.msra.mxu0 0
  %472 = vmatprep.subr.bf16.mxu0 0
  %473 = vmatpush1.bf16.msra.mxu0 0
  %474 = vmatprep.subr.bf16.mxu0 0
  %475 = vmatpush1.bf16.msra.mxu0 0
  %476 = vmatprep.subr.bf16.mxu0 0
  %477 = vmatpush1.bf16.msra.mxu0 0
  %478 = vmatprep.subr.bf16.mxu0 0
  %479 = vmatpush1.bf16.msra.mxu0 0
  %480 = vmatprep.subr.bf16.mxu0 0
  %481 = vmatpush1.bf16.msra.mxu0 0
  %482 = vmatprep.subr.bf16.mxu0 0
  %483 = vmatpush1.bf16.msra.mxu0 0
  %484 = vmatprep.subr.bf16.mxu0 0
  %485 = vmatpush1.bf16.msra.mxu0 0
  %486 = vmatprep.mubr.bf16.mxu0 0
  %487 = vmatmul.mubr.bf16.gmra.mrb[0].mxu0 %v452
  %v488 = vpop.f32.mrb[0].mxu0
  %v489 = vadd.f32 0.0, %v488
  %v490 = vpop.f32.mrb[0].mxu0
  %v491 = vpop.f32.mrb[0].mxu0
  %v492 = vpop.f32.mrb[0].mxu0
  %493 = vdwg.mxu0
  %s494 = scalar_lea.vmem %s0, 3
  %v495 = vld [vmem:[%s494] sm:$0x1]
  %v496 = vunpack.c.l.bf16 %v495
  %v497 = vadd.f32 %v496, %v489
  %v498 = vxor.u32 %v497, 2147483648
  %v499 = vmul.f32 %v498, 1.442695
  %v500 = vpow.pop %v499
  %v501 = vadd.f32 %v500, 1.0
  %v502 = vrcp.pop %v501
  %v503 = vmul.f32 1.0, %v502
  %v504 = vadd.f32 %v489, %v99
  %v507 = vunpack.c.l.s4 1983009808
  %v508 = vunpack.c.0.s8 %v507
  %v509 = vlaneseq
  %v510 = vshrl.u32 %v509, 7
  %v511 = vsub.s32 %v508, %v510
  %v512 = vrot.slane %v504, %v511
  %513 = vrot.lane.b32.xlu0 %v512, 64
  %v514 = vpop.permute.xlu0 %513
  %v516 = vmul.f32 %v503, %v514
  %518 = vrot.lane.b32.xlu0 %v516, 64
  %v519 = vpop.permute.xlu0 %518
  %v521 = vadd.f32 %v496, %v519
  %v522 = vtanh.pop %v521
  %v523 = vsub.f32 1.0, %v503
  %525 = vrot.lane.b32.xlu0 %v522, 96
  %v526 = vpop.permute.xlu0 %525
  %v528 = vmul.f32 %v523, %v526
  %v529 = vmul.f32 %v503, %v399
  %v530 = vadd.f32 %v528, %v529
  %v531 = vpack.c.bf16 %v530, %v530
  %v534 = vunpack.c.l.s4 1966171168
  %v535 = vunpack.c.0.s8 %v534
  %v536 = vlaneseq
  %v537 = vshrl.u32 %v536, 7
  %v538 = vsub.s32 %v535, %v537
  %v539 = vrot.slane %v531, %v538
  %v541 = vunpack.c.l.s4 1966171168
  %v542 = vunpack.c.0.s8 %v541
  %v543 = vlaneseq
  %v544 = vshrl.u32 %v543, 7
  %v545 = vsub.s32 %v542, %v544
  %v546 = vrot.slane %v539, %v545
  %v547 = vunpack.i.l.s16 %v546
  %v548 = vunpack.i.h.s16 %v546
  %v549 = vpack.i.b16 %v547, %v547
  %v550 = vpack.i.b16 %v548, %v548
  %v552 = vunpack.c.l.s4 286326784
  %v553 = vunpack.c.0.s8 %v552
  %v554 = vlaneseq
  %v555 = vshrl.u32 %v554, 7
  %v556 = vsub.s32 %v553, %v555
  %v557 = vrot.slane %v549, %v556
  %v559 = vunpack.c.l.s4 286326784
  %v560 = vunpack.c.0.s8 %v559
  %v561 = vlaneseq
  %v562 = vshrl.u32 %v561, 7
  %v563 = vsub.s32 %v560, %v562
  %v564 = vrot.slane %v550, %v563
  %565 = vrot.lane.b32.xlu0 %v557, 96
  %v566 = vpop.permute.xlu0 %565
  %567 = vrot.lane.b32.xlu0 %v564, 96
  %v568 = vpop.permute.xlu0 %567
  %vm571 = vsmask.f32 7942
  %vm572 = vmand %vm440, %vm571
  %v573 = vld [vmem:[%s3] sm:$0x2]
  %v574 = vsel %vm572, %v566, %v573
  %575 = vst [vmem:[%s3] sm:$0x2] %v574
  %v576 = vld [vmem:[%s3 + $0x4] sm:$0x2]
  %v577 = vsel %vm572, %v568, %v576
  %578 = vst [vmem:[%s3 + $0x4] sm:$0x2] %v577
  %579 = vrot.lane.b32.xlu0 %v531, 96
  %v580 = vpop.permute.xlu0 %579
  %v582 = vsel %vm45, %v580, 0
  %584 = vmatprep.subr.bf16.mxu0 0
  %585 = vmatpush1.bf16.msra.mxu0 %v41
  %586 = vmatprep.subr.bf16.mxu0 0
  %587 = vmatpush1.bf16.msra.mxu0 %v42
  %588 = vmatprep.subr.bf16.mxu0 0
  %589 = vmatpush1.bf16.msra.mxu0 0
  %590 = vmatprep.subr.bf16.mxu0 0
  %591 = vmatpush1.bf16.msra.mxu0 0
  %592 = vmatprep.subr.bf16.mxu0 0
  %593 = vmatpush1.bf16.msra.mxu0 0
  %594 = vmatprep.subr.bf16.mxu0 0
  %595 = vmatpush1.bf16.msra.mxu0 0
  %596 = vmatprep.subr.bf16.mxu0 0
  %597 = vmatpush1.bf16.msra.mxu0 0
  %598 = vmatprep.subr.bf16.mxu0 0
  %599 = vmatpush1.bf16.msra.mxu0 0
  %600 = vmatprep.subr.bf16.mxu0 0
  %601 = vmatpush1.bf16.msra.mxu0 0
  %602 = vmatprep.subr.bf16.mxu0 0
  %603 = vmatpush1.bf16.msra.mxu0 0
  %604 = vmatprep.subr.bf16.mxu0 0
  %605 = vmatpush1.bf16.msra.mxu0 0
  %606 = vmatprep.subr.bf16.mxu0 0
  %607 = vmatpush1.bf16.msra.mxu0 0
  %608 = vmatprep.subr.bf16.mxu0 0
  %609 = vmatpush1.bf16.msra.mxu0 0
  %610 = vmatprep.subr.bf16.mxu0 0
  %611 = vmatpush1.bf16.msra.mxu0 0
  %612 = vmatprep.subr.bf16.mxu0 0
  %613 = vmatpush1.bf16.msra.mxu0 0
  %614 = vmatprep.subr.bf16.mxu0 0
  %615 = vmatpush1.bf16.msra.mxu0 0
  %616 = vmatprep.mubr.bf16.mxu0 0
  %617 = vmatmul.mubr.bf16.gmra.mrb[0].mxu0 %v582
  %v618 = vpop.f32.mrb[0].mxu0
  %v619 = vadd.f32 0.0, %v618
  %v620 = vpop.f32.mrb[0].mxu0
  %v621 = vpop.f32.mrb[0].mxu0
  %v622 = vpop.f32.mrb[0].mxu0
  %623 = vdwg.mxu0
  %s624 = scalar_lea.vmem %s0, 4
  %v625 = vld [vmem:[%s624] sm:$0x1]
  %v626 = vunpack.c.l.bf16 %v625
  %v627 = vadd.f32 %v626, %v619
  %v628 = vxor.u32 %v627, 2147483648
  %v629 = vmul.f32 %v628, 1.442695
  %v630 = vpow.pop %v629
  %v631 = vadd.f32 %v630, 1.0
  %v632 = vrcp.pop %v631
  %v633 = vmul.f32 1.0, %v632
  %v634 = vadd.f32 %v619, %v99
  %v637 = vunpack.c.l.s4 1983009808
  %v638 = vunpack.c.0.s8 %v637
  %v639 = vlaneseq
  %v640 = vshrl.u32 %v639, 7
  %v641 = vsub.s32 %v638, %v640
  %v642 = vrot.slane %v634, %v641
  %643 = vrot.lane.b32.xlu0 %v642, 64
  %v644 = vpop.permute.xlu0 %643
  %v646 = vmul.f32 %v633, %v644
  %648 = vrot.lane.b32.xlu0 %v646, 64
  %v649 = vpop.permute.xlu0 %648
  %v651 = vadd.f32 %v626, %v649
  %v652 = vtanh.pop %v651
  %v653 = vsub.f32 1.0, %v633
  %655 = vrot.lane.b32.xlu0 %v652, 96
  %v656 = vpop.permute.xlu0 %655
  %v658 = vmul.f32 %v653, %v656
  %v659 = vmul.f32 %v633, %v530
  %v660 = vadd.f32 %v658, %v659
  %v661 = vpack.c.bf16 %v660, %v660
  %v664 = vunpack.c.l.s4 1966171168
  %v665 = vunpack.c.0.s8 %v664
  %v666 = vlaneseq
  %v667 = vshrl.u32 %v666, 7
  %v668 = vsub.s32 %v665, %v667
  %v669 = vrot.slane %v661, %v668
  %v671 = vunpack.c.l.s4 1966171168
  %v672 = vunpack.c.0.s8 %v671
  %v673 = vlaneseq
  %v674 = vshrl.u32 %v673, 7
  %v675 = vsub.s32 %v672, %v674
  %v676 = vrot.slane %v669, %v675
  %v677 = vunpack.i.l.s16 %v676
  %v678 = vunpack.i.h.s16 %v676
  %v679 = vpack.i.b16 %v677, %v677
  %v680 = vpack.i.b16 %v678, %v678
  %v682 = vunpack.c.l.s4 286326784
  %v683 = vunpack.c.0.s8 %v682
  %v684 = vlaneseq
  %v685 = vshrl.u32 %v684, 7
  %v686 = vsub.s32 %v683, %v685
  %v687 = vrot.slane %v679, %v686
  %v689 = vunpack.c.l.s4 286326784
  %v690 = vunpack.c.0.s8 %v689
  %v691 = vlaneseq
  %v692 = vshrl.u32 %v691, 7
  %v693 = vsub.s32 %v690, %v692
  %v694 = vrot.slane %v680, %v693
  %695 = vrot.lane.b32.xlu0 %v687, 96
  %v696 = vpop.permute.xlu0 %695
  %697 = vrot.lane.b32.xlu0 %v694, 96
  %v698 = vpop.permute.xlu0 %697
  %vm701 = vcmask 256002
  %vm702 = vsmask.f32 2304
  %vm703 = vmand %vm701, %vm702
  %v704 = vld [vmem:[%s3] sm:$0x4]
  %v705 = vsel %vm703, %v696, %v704
  %706 = vst [vmem:[%s3] sm:$0x4] %v705
  %v707 = vld [vmem:[%s3 + $0x4] sm:$0x4]
  %v708 = vsel %vm703, %v698, %v707
  %709 = vst [vmem:[%s3 + $0x4] sm:$0x4] %v708
  %710 = vrot.lane.b32.xlu0 %v661, 96
  %v711 = vpop.permute.xlu0 %710
  %v713 = vsel %vm45, %v711, 0
  %715 = vmatprep.subr.bf16.mxu0 0
  %716 = vmatpush1.bf16.msra.mxu0 %v41
  %717 = vmatprep.subr.bf16.mxu0 0
  %718 = vmatpush1.bf16.msra.mxu0 %v42
  %719 = vmatprep.subr.bf16.mxu0 0
  %720 = vmatpush1.bf16.msra.mxu0 0
  %721 = vmatprep.subr.bf16.mxu0 0
  %722 = vmatpush1.bf16.msra.mxu0 0
  %723 = vmatprep.subr.bf16.mxu0 0
  %724 = vmatpush1.bf16.msra.mxu0 0
  %725 = vmatprep.subr.bf16.mxu0 0
  %726 = vmatpush1.bf16.msra.mxu0 0
  %727 = vmatprep.subr.bf16.mxu0 0
  %728 = vmatpush1.bf16.msra.mxu0 0
  %729 = vmatprep.subr.bf16.mxu0 0
  %730 = vmatpush1.bf16.msra.mxu0 0
  %731 = vmatprep.subr.bf16.mxu0 0
  %732 = vmatpush1.bf16.msra.mxu0 0
  %733 = vmatprep.subr.bf16.mxu0 0
  %734 = vmatpush1.bf16.msra.mxu0 0
  %735 = vmatprep.subr.bf16.mxu0 0
  %736 = vmatpush1.bf16.msra.mxu0 0
  %737 = vmatprep.subr.bf16.mxu0 0
  %738 = vmatpush1.bf16.msra.mxu0 0
  %739 = vmatprep.subr.bf16.mxu0 0
  %740 = vmatpush1.bf16.msra.mxu0 0
  %741 = vmatprep.subr.bf16.mxu0 0
  %742 = vmatpush1.bf16.msra.mxu0 0
  %743 = vmatprep.subr.bf16.mxu0 0
  %744 = vmatpush1.bf16.msra.mxu0 0
  %745 = vmatprep.subr.bf16.mxu0 0
  %746 = vmatpush1.bf16.msra.mxu0 0
  %747 = vmatprep.mubr.bf16.mxu0 0
  %748 = vmatmul.mubr.bf16.gmra.mrb[0].mxu0 %v713
  %v749 = vpop.f32.mrb[0].mxu0
  %v750 = vadd.f32 0.0, %v749
  %v751 = vpop.f32.mrb[0].mxu0
  %v752 = vpop.f32.mrb[0].mxu0
  %v753 = vpop.f32.mrb[0].mxu0
  %754 = vdwg.mxu0
  %s755 = scalar_lea.vmem %s0, 5
  %v756 = vld [vmem:[%s755] sm:$0x1]
  %v757 = vunpack.c.l.bf16 %v756
  %v758 = vadd.f32 %v757, %v750
  %v759 = vxor.u32 %v758, 2147483648
  %v760 = vmul.f32 %v759, 1.442695
  %v761 = vpow.pop %v760
  %v762 = vadd.f32 %v761, 1.0
  %v763 = vrcp.pop %v762
  %v764 = vmul.f32 1.0, %v763
  %v765 = vadd.f32 %v750, %v99
  %v768 = vunpack.c.l.s4 1983009808
  %v769 = vunpack.c.0.s8 %v768
  %v770 = vlaneseq
  %v771 = vshrl.u32 %v770, 7
  %v772 = vsub.s32 %v769, %v771
  %v773 = vrot.slane %v765, %v772
  %774 = vrot.lane.b32.xlu0 %v773, 64
  %v775 = vpop.permute.xlu0 %774
  %v777 = vmul.f32 %v764, %v775
  %779 = vrot.lane.b32.xlu0 %v777, 64
  %v780 = vpop.permute.xlu0 %779
  %v782 = vadd.f32 %v757, %v780
  %v783 = vtanh.pop %v782
  %v784 = vsub.f32 1.0, %v764
  %786 = vrot.lane.b32.xlu0 %v783, 96
  %v787 = vpop.permute.xlu0 %786
  %v789 = vmul.f32 %v784, %v787
  %v790 = vmul.f32 %v764, %v660
  %v791 = vadd.f32 %v789, %v790
  %v792 = vpack.c.bf16 %v791, %v791
  %v795 = vunpack.c.l.s4 1966171168
  %v796 = vunpack.c.0.s8 %v795
  %v797 = vlaneseq
  %v798 = vshrl.u32 %v797, 7
  %v799 = vsub.s32 %v796, %v798
  %v800 = vrot.slane %v792, %v799
  %v802 = vunpack.c.l.s4 1966171168
  %v803 = vunpack.c.0.s8 %v802
  %v804 = vlaneseq
  %v805 = vshrl.u32 %v804, 7
  %v806 = vsub.s32 %v803, %v805
  %v807 = vrot.slane %v800, %v806
  %v808 = vunpack.i.l.s16 %v807
  %v809 = vunpack.i.h.s16 %v807
  %v810 = vpack.i.b16 %v808, %v808
  %v811 = vpack.i.b16 %v809, %v809
  %v813 = vunpack.c.l.s4 286326784
  %v814 = vunpack.c.0.s8 %v813
  %v815 = vlaneseq
  %v816 = vshrl.u32 %v815, 7
  %v817 = vsub.s32 %v814, %v816
  %v818 = vrot.slane %v810, %v817
  %v820 = vunpack.c.l.s4 286326784
  %v821 = vunpack.c.0.s8 %v820
  %v822 = vlaneseq
  %v823 = vshrl.u32 %v822, 7
  %v824 = vsub.s32 %v821, %v823
  %v825 = vrot.slane %v811, %v824
  %826 = vrot.lane.b32.xlu0 %v818, 96
  %v827 = vpop.permute.xlu0 %826
  %828 = vrot.lane.b32.xlu0 %v825, 96
  %v829 = vpop.permute.xlu0 %828
  %vm832 = vsmask.f32 7946
  %vm833 = vmand %vm701, %vm832
  %v834 = vld [vmem:[%s3] sm:$0x4]
  %v835 = vsel %vm833, %v827, %v834
  %836 = vst [vmem:[%s3] sm:$0x4] %v835
  %v837 = vld [vmem:[%s3 + $0x4] sm:$0x4]
  %v838 = vsel %vm833, %v829, %v837
  %839 = vst [vmem:[%s3 + $0x4] sm:$0x4] %v838
  %840 = vrot.lane.b32.xlu0 %v792, 96
  %v841 = vpop.permute.xlu0 %840
  %v843 = vsel %vm45, %v841, 0
  %845 = vmatprep.subr.bf16.mxu0 0
  %846 = vmatpush1.bf16.msra.mxu0 %v41
  %847 = vmatprep.subr.bf16.mxu0 0
  %848 = vmatpush1.bf16.msra.mxu0 %v42
  %849 = vmatprep.subr.bf16.mxu0 0
  %850 = vmatpush1.bf16.msra.mxu0 0
  %851 = vmatprep.subr.bf16.mxu0 0
  %852 = vmatpush1.bf16.msra.mxu0 0
  %853 = vmatprep.subr.bf16.mxu0 0
  %854 = vmatpush1.bf16.msra.mxu0 0
  %855 = vmatprep.subr.bf16.mxu0 0
  %856 = vmatpush1.bf16.msra.mxu0 0
  %857 = vmatprep.subr.bf16.mxu0 0
  %858 = vmatpush1.bf16.msra.mxu0 0
  %859 = vmatprep.subr.bf16.mxu0 0
  %860 = vmatpush1.bf16.msra.mxu0 0
  %861 = vmatprep.subr.bf16.mxu0 0
  %862 = vmatpush1.bf16.msra.mxu0 0
  %863 = vmatprep.subr.bf16.mxu0 0
  %864 = vmatpush1.bf16.msra.mxu0 0
  %865 = vmatprep.subr.bf16.mxu0 0
  %866 = vmatpush1.bf16.msra.mxu0 0
  %867 = vmatprep.subr.bf16.mxu0 0
  %868 = vmatpush1.bf16.msra.mxu0 0
  %869 = vmatprep.subr.bf16.mxu0 0
  %870 = vmatpush1.bf16.msra.mxu0 0
  %871 = vmatprep.subr.bf16.mxu0 0
  %872 = vmatpush1.bf16.msra.mxu0 0
  %873 = vmatprep.subr.bf16.mxu0 0
  %874 = vmatpush1.bf16.msra.mxu0 0
  %875 = vmatprep.subr.bf16.mxu0 0
  %876 = vmatpush1.bf16.msra.mxu0 0
  %877 = vmatprep.mubr.bf16.mxu0 0
  %878 = vmatmul.mubr.bf16.gmra.mrb[0].mxu0 %v843
  %v879 = vpop.f32.mrb[0].mxu0
  %v880 = vadd.f32 0.0, %v879
  %v881 = vpop.f32.mrb[0].mxu0
  %v882 = vpop.f32.mrb[0].mxu0
  %v883 = vpop.f32.mrb[0].mxu0
  %884 = vdwg.mxu0
  %s885 = scalar_lea.vmem %s0, 6
  %v886 = vld [vmem:[%s885] sm:$0x1]
  %v887 = vunpack.c.l.bf16 %v886
  %v888 = vadd.f32 %v887, %v880
  %v889 = vxor.u32 %v888, 2147483648
  %v890 = vmul.f32 %v889, 1.442695
  %v891 = vpow.pop %v890
  %v892 = vadd.f32 %v891, 1.0
  %v893 = vrcp.pop %v892
  %v894 = vmul.f32 1.0, %v893
  %v895 = vadd.f32 %v880, %v99
  %v898 = vunpack.c.l.s4 1983009808
  %v899 = vunpack.c.0.s8 %v898
  %v900 = vlaneseq
  %v901 = vshrl.u32 %v900, 7
  %v902 = vsub.s32 %v899, %v901
  %v903 = vrot.slane %v895, %v902
  %904 = vrot.lane.b32.xlu0 %v903, 64
  %v905 = vpop.permute.xlu0 %904
  %v907 = vmul.f32 %v894, %v905
  %909 = vrot.lane.b32.xlu0 %v907, 64
  %v910 = vpop.permute.xlu0 %909
  %v912 = vadd.f32 %v887, %v910
  %v913 = vtanh.pop %v912
  %v914 = vsub.f32 1.0, %v894
  %916 = vrot.lane.b32.xlu0 %v913, 96
  %v917 = vpop.permute.xlu0 %916
  %v919 = vmul.f32 %v914, %v917
  %v920 = vmul.f32 %v894, %v791
  %v921 = vadd.f32 %v919, %v920
  %v922 = vpack.c.bf16 %v921, %v921
  %v925 = vunpack.c.l.s4 1966171168
  %v926 = vunpack.c.0.s8 %v925
  %v927 = vlaneseq
  %v928 = vshrl.u32 %v927, 7
  %v929 = vsub.s32 %v926, %v928
  %v930 = vrot.slane %v922, %v929
  %v932 = vunpack.c.l.s4 1966171168
  %v933 = vunpack.c.0.s8 %v932
  %v934 = vlaneseq
  %v935 = vshrl.u32 %v934, 7
  %v936 = vsub.s32 %v933, %v935
  %v937 = vrot.slane %v930, %v936
  %v938 = vunpack.i.l.s16 %v937
  %v939 = vunpack.i.h.s16 %v937
  %v940 = vpack.i.b16 %v938, %v938
  %v941 = vpack.i.b16 %v939, %v939
  %v943 = vunpack.c.l.s4 286326784
  %v944 = vunpack.c.0.s8 %v943
  %v945 = vlaneseq
  %v946 = vshrl.u32 %v945, 7
  %v947 = vsub.s32 %v944, %v946
  %v948 = vrot.slane %v940, %v947
  %v950 = vunpack.c.l.s4 286326784
  %v951 = vunpack.c.0.s8 %v950
  %v952 = vlaneseq
  %v953 = vshrl.u32 %v952, 7
  %v954 = vsub.s32 %v951, %v953
  %v955 = vrot.slane %v941, %v954
  %956 = vrot.lane.b32.xlu0 %v948, 96
  %v957 = vpop.permute.xlu0 %956
  %958 = vrot.lane.b32.xlu0 %v955, 96
  %v959 = vpop.permute.xlu0 %958
  %vm962 = vcmask 257027
  %vm963 = vsmask.f32 3328
  %vm964 = vmand %vm962, %vm963
  %v965 = vld [vmem:[%s3] sm:$0x8]
  %v966 = vsel %vm964, %v957, %v965
  %967 = vst [vmem:[%s3] sm:$0x8] %v966
  %v968 = vld [vmem:[%s3 + $0x4] sm:$0x8]
  %v969 = vsel %vm964, %v959, %v968
  %970 = vst [vmem:[%s3 + $0x4] sm:$0x8] %v969
  %971 = vrot.lane.b32.xlu0 %v922, 96
  %v972 = vpop.permute.xlu0 %971
  %v974 = vsel %vm45, %v972, 0
  %976 = vmatprep.subr.bf16.mxu0 0
  %977 = vmatpush1.bf16.msra.mxu0 %v41
  %978 = vmatprep.subr.bf16.mxu0 0
  %979 = vmatpush1.bf16.msra.mxu0 %v42
  %980 = vmatprep.subr.bf16.mxu0 0
  %981 = vmatpush1.bf16.msra.mxu0 0
  %982 = vmatprep.subr.bf16.mxu0 0
  %983 = vmatpush1.bf16.msra.mxu0 0
  %984 = vmatprep.subr.bf16.mxu0 0
  %985 = vmatpush1.bf16.msra.mxu0 0
  %986 = vmatprep.subr.bf16.mxu0 0
  %987 = vmatpush1.bf16.msra.mxu0 0
  %988 = vmatprep.subr.bf16.mxu0 0
  %989 = vmatpush1.bf16.msra.mxu0 0
  %990 = vmatprep.subr.bf16.mxu0 0
  %991 = vmatpush1.bf16.msra.mxu0 0
  %992 = vmatprep.subr.bf16.mxu0 0
  %993 = vmatpush1.bf16.msra.mxu0 0
  %994 = vmatprep.subr.bf16.mxu0 0
  %995 = vmatpush1.bf16.msra.mxu0 0
  %996 = vmatprep.subr.bf16.mxu0 0
  %997 = vmatpush1.bf16.msra.mxu0 0
  %998 = vmatprep.subr.bf16.mxu0 0
  %999 = vmatpush1.bf16.msra.mxu0 0
  %1000 = vmatprep.subr.bf16.mxu0 0
  %1001 = vmatpush1.bf16.msra.mxu0 0
  %1002 = vmatprep.subr.bf16.mxu0 0
  %1003 = vmatpush1.bf16.msra.mxu0 0
  %1004 = vmatprep.subr.bf16.mxu0 0
  %1005 = vmatpush1.bf16.msra.mxu0 0
  %1006 = vmatprep.subr.bf16.mxu0 0
  %1007 = vmatpush1.bf16.msra.mxu0 0
  %1008 = vmatprep.mubr.bf16.mxu0 0
  %1009 = vmatmul.mubr.bf16.gmra.mrb[0].mxu0 %v974
  %v1010 = vpop.f32.mrb[0].mxu0
  %v1011 = vadd.f32 0.0, %v1010
  %v1012 = vpop.f32.mrb[0].mxu0
  %v1013 = vpop.f32.mrb[0].mxu0
  %v1014 = vpop.f32.mrb[0].mxu0
  %1015 = vdwg.mxu0
  %s1016 = scalar_lea.vmem %s0, 7
  %v1017 = vld [vmem:[%s1016] sm:$0x1]
  %v1018 = vunpack.c.l.bf16 %v1017
  %v1019 = vadd.f32 %v1018, %v1011
  %v1020 = vxor.u32 %v1019, 2147483648
  %v1021 = vmul.f32 %v1020, 1.442695
  %v1022 = vpow.pop %v1021
  %v1023 = vadd.f32 %v1022, 1.0
  %v1024 = vrcp.pop %v1023
  %v1025 = vmul.f32 1.0, %v1024
  %v1026 = vadd.f32 %v1011, %v99
  %v1029 = vunpack.c.l.s4 1983009808
  %v1030 = vunpack.c.0.s8 %v1029
  %v1031 = vlaneseq
  %v1032 = vshrl.u32 %v1031, 7
  %v1033 = vsub.s32 %v1030, %v1032
  %v1034 = vrot.slane %v1026, %v1033
  %1035 = vrot.lane.b32.xlu0 %v1034, 64
  %v1036 = vpop.permute.xlu0 %1035
  %v1038 = vmul.f32 %v1025, %v1036
  %1040 = vrot.lane.b32.xlu0 %v1038, 64
  %v1041 = vpop.permute.xlu0 %1040
  %v1043 = vadd.f32 %v1018, %v1041
  %v1044 = vtanh.pop %v1043
  %v1045 = vsub.f32 1.0, %v1025
  %1047 = vrot.lane.b32.xlu0 %v1044, 96
  %v1048 = vpop.permute.xlu0 %1047
  %v1050 = vmul.f32 %v1045, %v1048
  %v1051 = vmul.f32 %v1025, %v921
  %v1052 = vadd.f32 %v1050, %v1051
  %v1053 = vpack.c.bf16 %v1052, %v1052
  %v1056 = vunpack.c.l.s4 1966171168
  %v1057 = vunpack.c.0.s8 %v1056
  %v1058 = vlaneseq
  %v1059 = vshrl.u32 %v1058, 7
  %v1060 = vsub.s32 %v1057, %v1059
  %v1061 = vrot.slane %v1053, %v1060
  %v1063 = vunpack.c.l.s4 1966171168
  %v1064 = vunpack.c.0.s8 %v1063
  %v1065 = vlaneseq
  %v1066 = vshrl.u32 %v1065, 7
  %v1067 = vsub.s32 %v1064, %v1066
  %v1068 = vrot.slane %v1061, %v1067
  %v1069 = vunpack.i.l.s16 %v1068
  %v1070 = vunpack.i.h.s16 %v1068
  %v1071 = vpack.i.b16 %v1069, %v1069
  %v1072 = vpack.i.b16 %v1070, %v1070
  %v1074 = vunpack.c.l.s4 286326784
  %v1075 = vunpack.c.0.s8 %v1074
  %v1076 = vlaneseq
  %v1077 = vshrl.u32 %v1076, 7
  %v1078 = vsub.s32 %v1075, %v1077
  %v1079 = vrot.slane %v1071, %v1078
  %v1081 = vunpack.c.l.s4 286326784
  %v1082 = vunpack.c.0.s8 %v1081
  %v1083 = vlaneseq
  %v1084 = vshrl.u32 %v1083, 7
  %v1085 = vsub.s32 %v1082, %v1084
  %v1086 = vrot.slane %v1072, %v1085
  %1087 = vrot.lane.b32.xlu0 %v1079, 96
  %v1088 = vpop.permute.xlu0 %1087
  %1089 = vrot.lane.b32.xlu0 %v1086, 96
  %v1090 = vpop.permute.xlu0 %1089
  %vm1093 = vsmask.f32 7950
  %vm1094 = vmand %vm962, %vm1093
  %v1095 = vld [vmem:[%s3] sm:$0x8]
  %v1096 = vsel %vm1094, %v1088, %v1095
  %1097 = vst [vmem:[%s3] sm:$0x8] %v1096
  %v1098 = vld [vmem:[%s3 + $0x4] sm:$0x8]
  %v1099 = vsel %vm1094, %v1090, %v1098
  %1100 = vst [vmem:[%s3 + $0x4] sm:$0x8] %v1099
  %v1103 = vunpack.c.l.s4 1983009808
  %v1104 = vunpack.c.0.s8 %v1103
  %v1105 = vlaneseq
  %v1106 = vshrl.u32 %v1105, 7
  %v1107 = vsub.s32 %v1104, %v1106
  %v1108 = vrot.slane %v1052, %v1107
  %1109 = vrot.lane.b32.xlu0 %v1108, 96
  %v1110 = vpop.permute.xlu0 %1109
  %vm1112 = vcmask 254976
  %1113 = vst.msk [vmem:[#allocation2] sm:$0x3] %vm1112, %v1110
  // Predicated region
  $region18: #{svae_forward.4} parent=0 // pred_check
    _
  $region19: #{svae_forward.4} parent=0 // pred_check_branch
    %1115 = sbr.rel (0) target = $region21
  $region20: #{svae_forward.4} parent=0 // pred_region
    _
  $region21: #{svae_forward.4} parent=0 // pred_fallthru
    _
  // Predicated region
  $region22: #{svae_forward.4} parent=0 // pred_check
    _
  $region23: #{svae_forward.4} parent=0 // pred_check_branch
    %1117 = sbr.rel (0) target = $region25
  $region24: #{svae_forward.4} parent=0 // pred_region
    _
  $region25: #{svae_forward.4} parent=0 // pred_fallthru
    _

</llo_original>
